<compile_context>
chip_gen: v6e
topology: v6e:2x2x1
jax: 0.10.0
libtpu: 0.0.40
codegen_flags: <defaults>
</compile_context>

<pallas_src>
import jax
import jax.numpy as jnp
from jax.experimental import pallas as pl
from jax.experimental.pallas import tpu as pltpu


def _mlp_readout_kernel(x_ref, w0_ref, w1_ref, w2_ref, o_ref):
    """Fused 3-layer MLP readout: relu(relu(relu(x@W0)@W1)@W2).

    x arrives in its native dtype and is cast to the weight (compute) dtype
    here, in VMEM, so HBM only ever sees the original x bytes. Every matmul
    accumulates in f32 on the MXU; intermediates are re-cast to the weight
    dtype so both MXU operands stay narrow on the bf16 path.
    """
    x = x_ref[...].astype(w0_ref.dtype)
    h = jnp.dot(x, w0_ref[...], preferred_element_type=jnp.float32)
    h = jnp.maximum(h, 0.0)
    h = jnp.dot(h.astype(w1_ref.dtype), w1_ref[...],
                preferred_element_type=jnp.float32)
    h = jnp.maximum(h, 0.0)
    h = jnp.dot(h.astype(w2_ref.dtype), w2_ref[...],
                preferred_element_type=jnp.float32)
    h = jnp.maximum(h, 0.0)
    o_ref[...] = h.astype(o_ref.dtype)


def _round_up(a, b):
    return pl.cdiv(a, b) * b


def _lane_pad(d):
    # Anything narrower than a vreg row still occupies 128 lanes in VMEM.
    return _round_up(max(int(d), 1), 128)


def mlp_readout(x, w0, w1, w2, *, tm=2048, compute_dtype=jnp.bfloat16):
    """Forward pass of MLPReadout.

    x:  (N, in_dim) node features, any float dtype (kept in native dtype in
        HBM; cast to `compute_dtype` inside the kernel).
    w0/w1/w2: PyTorch nn.Linear weights, layout (out_features, in_features),
              bias=False in the module so there are no bias terms.
    tm: row tile. Default 2048 keeps per-step fixed overhead (~0.35 us)
        negligible vs. the block DMA while staying well inside even v7x's
        64 MiB VMEM; sweep 1024-4096 on v7x, up to ~8192 on v6e/v5e.
    """
    n, in_dim = x.shape
    hid = w0.shape[0]
    hid2 = w1.shape[0]
    out_dim = w2.shape[0]
    out_dtype = x.dtype

    # --- row tiling (no wrapper-side pad/slice; Pallas masks ragged blocks) --
    tm_rounded = max(8, _round_up(tm, 8))
    if n <= tm_rounded:
        # Single block covering the full row extent (always a legal block
        # shape since it equals the array dim).
        tm_eff = n
    else:
        # Multiple of 8 (sublane); the trailing partial block's OOB rows are
        # garbage-in / masked-out on writeback, and rows are independent.
        tm_eff = tm_rounded
    grid = (pl.cdiv(n, tm_eff),)

    # Weights are tiny: pre-transpose to (in_features, out_features) and cast
    # to the compute dtype in the wrapper (negligible HBM traffic).
    w0t = w0.T.astype(compute_dtype)   # (in_dim, hid)
    w1t = w1.T.astype(compute_dtype)   # (hid,   hid2)
    w2t = w2.T.astype(compute_dtype)   # (hid2,  out_dim)

    # --- explicit scoped-VMEM budget for large row tiles ---------------------
    rows = _round_up(tm_eff, 8)
    isz = lambda dt: jnp.dtype(dt).itemsize
    vmem_est = (
        2 * rows * _lane_pad(in_dim) * isz(x.dtype)          # x block, double-buffered
        + 2 * rows * _lane_pad(out_dim) * isz(out_dtype)     # out block, double-buffered
        + 3 * rows * _lane_pad(hid) * 4                      # f32 intermediates
        + 2 * (_round_up(in_dim, 8) * _lane_pad(hid)
               + _round_up(hid, 8) * _lane_pad(hid2)
               + _round_up(hid2, 8) * _lane_pad(out_dim)) * isz(compute_dtype)
    )
    vmem_limit = int(min(max(int(1.5 * vmem_est) + (2 << 20), 32 << 20), 64 << 20))

    out = pl.pallas_call(
        _mlp_readout_kernel,
        out_shape=jax.ShapeDtypeStruct((n, out_dim), out_dtype),
        grid_spec=pltpu.PrefetchScalarGridSpec(
            num_scalar_prefetch=0,
            grid=grid,
            in_specs=[
                pl.BlockSpec((tm_eff, in_dim), lambda i: (i, 0)),
                # Grid-invariant weight blocks: constant index map, DMA'd once.
                pl.BlockSpec((in_dim, hid), lambda i: (0, 0)),
                pl.BlockSpec((hid, hid2), lambda i: (0, 0)),
                pl.BlockSpec((hid2, out_dim), lambda i: (0, 0)),
            ],
            out_specs=pl.BlockSpec((tm_eff, out_dim), lambda i: (i, 0)),
        ),
        compiler_params=pltpu.CompilerParams(
            dimension_semantics=("parallel",),
            vmem_limit_bytes=vmem_limit,
        ),
    )(x, w0t, w1t, w2t)
    return out


def _reference(x, w0, w1, w2):
    h = jnp.maximum(x @ w0.T, 0.0)
    h = jnp.maximum(h @ w1.T, 0.0)
    h = jnp.maximum(h @ w2.T, 0.0)
    return h


if __name__ == "__main__":
    # Module config (L=3 default): in_dim -> hid_dim -> hid_dim//2 -> out_dim.
    in_dim, hid_dim, out_dim = 32, 32, 8
    n_nodes = 500  # not a multiple of 8/128 -> exercises ragged-row handling

    key = jax.random.PRNGKey(0)
    kx, k0, k1, k2 = jax.random.split(key, 4)

    x = jax.random.normal(kx, (n_nodes, in_dim), dtype=jnp.float32)
    # Deterministic synthetic weights, PyTorch Linear layout (out_f, in_f),
    # scaled ~1/sqrt(fan_in) so activations stay O(1).
    w0 = jax.random.normal(k0, (hid_dim, in_dim), dtype=jnp.float32) * (in_dim ** -0.5)
    w1 = jax.random.normal(k1, (hid_dim // 2, hid_dim), dtype=jnp.float32) * (hid_dim ** -0.5)
    w2 = jax.random.normal(k2, (out_dim, hid_dim // 2), dtype=jnp.float32) * ((hid_dim // 2) ** -0.5)

    ref = _reference(x, w0, w1, w2)

    # 1) Exact-semantics check: f32 compute path, single block (tm > N).
    out_f32 = jax.block_until_ready(
        mlp_readout(x, w0, w1, w2, compute_dtype=jnp.float32))
    assert out_f32.shape == (n_nodes, out_dim)
    assert jnp.allclose(out_f32, ref, atol=1e-5, rtol=1e-5)

    # 2) Multi-step grid with a ragged trailing block (500 = 3*128 + 116):
    #    exercises the masked partial-block writeback path.
    out_tiled = jax.block_until_ready(
        mlp_readout(x, w0, w1, w2, tm=128, compute_dtype=jnp.float32))
    assert jnp.allclose(out_tiled, ref, atol=1e-5, rtol=1e-5)

    # 3) Default fast path: bf16 operands in VMEM, f32 accumulation.
    out = jax.block_until_ready(mlp_readout(x, w0, w1, w2))
    assert out.shape == (n_nodes, out_dim)
    max_err = jnp.max(jnp.abs(out.astype(jnp.float32) - ref))
    assert max_err <= 2e-2 * jnp.max(jnp.abs(ref)) + 1e-3, max_err

    print("KERNEL_OK")
</pallas_src>

<mosaic_0001>
module attributes {stable_mosaic.version = 11 : i64} {
  func.func @_mlp_readout_kernel(%arg0: i32, %arg1: memref<500x32xf32, #tpu.memory_space<vmem>>, %arg2: memref<32x32xf32, #tpu.memory_space<vmem>>, %arg3: memref<32x16xf32, #tpu.memory_space<vmem>>, %arg4: memref<16x8xf32, #tpu.memory_space<vmem>>, %arg5: memref<500x8xf32, #tpu.memory_space<vmem>>) attributes {dimension_semantics = [#tpu.dimension_semantics<parallel>], iteration_bounds = array<i64: 1>, scalar_prefetch = 0 : i64, scratch_operands = 0 : i64, tpu.core_type = #tpu.core_type<tc>, window_params = [{transform_indices = @transform_0, window_bounds = array<i64: 500, 32>}, {pipeline_mode = #tpu.pipeline_mode<synchronous>, transform_indices = @transform_1, window_bounds = array<i64: 32, 32>}, {pipeline_mode = #tpu.pipeline_mode<synchronous>, transform_indices = @transform_2, window_bounds = array<i64: 32, 16>}, {pipeline_mode = #tpu.pipeline_mode<synchronous>, transform_indices = @transform_3, window_bounds = array<i64: 16, 8>}, {transform_indices = @transform_4, window_bounds = array<i64: 500, 8>}]} {
    %c0 = arith.constant 0 : index
    %c0_0 = arith.constant 0 : index
    %0 = vector.load %arg1[%c0, %c0_0] : memref<500x32xf32, #tpu.memory_space<vmem>>, vector<500x32xf32>
    %c0_1 = arith.constant 0 : index
    %c0_2 = arith.constant 0 : index
    %1 = vector.load %arg2[%c0_1, %c0_2] : memref<32x32xf32, #tpu.memory_space<vmem>>, vector<32x32xf32>
    %cst = arith.constant dense<0.000000e+00> : vector<500x32xf32>
    %2 = tpu.matmul %0, %1, %cst {dimension_numbers = #tpu.dot_dimension_numbers<[1], [0], [0], [1], [0, 0, 1, 1], [], []>} : vector<500x32xf32>, vector<32x32xf32>, vector<500x32xf32> -> vector<500x32xf32>
    %cst_3 = arith.constant 0.000000e+00 : f32
    %3 = vector.broadcast %cst_3 : f32 to vector<500x32xf32>
    %4 = arith.maximumf %2, %3 : vector<500x32xf32>
    %c0_4 = arith.constant 0 : index
    %c0_5 = arith.constant 0 : index
    %5 = vector.load %arg3[%c0_4, %c0_5] : memref<32x16xf32, #tpu.memory_space<vmem>>, vector<32x16xf32>
    %cst_6 = arith.constant dense<0.000000e+00> : vector<500x16xf32>
    %6 = tpu.matmul %4, %5, %cst_6 {dimension_numbers = #tpu.dot_dimension_numbers<[1], [0], [0], [1], [0, 0, 1, 1], [], []>} : vector<500x32xf32>, vector<32x16xf32>, vector<500x16xf32> -> vector<500x16xf32>
    %cst_7 = arith.constant 0.000000e+00 : f32
    %7 = vector.broadcast %cst_7 : f32 to vector<500x16xf32>
    %8 = arith.maximumf %6, %7 : vector<500x16xf32>
    %c0_8 = arith.constant 0 : index
    %c0_9 = arith.constant 0 : index
    %9 = vector.load %arg4[%c0_8, %c0_9] : memref<16x8xf32, #tpu.memory_space<vmem>>, vector<16x8xf32>
    %cst_10 = arith.constant dense<0.000000e+00> : vector<500x8xf32>
    %10 = tpu.matmul %8, %9, %cst_10 {dimension_numbers = #tpu.dot_dimension_numbers<[1], [0], [0], [1], [0, 0, 1, 1], [], []>} : vector<500x16xf32>, vector<16x8xf32>, vector<500x8xf32> -> vector<500x8xf32>
    %cst_11 = arith.constant 0.000000e+00 : f32
    %11 = vector.broadcast %cst_11 : f32 to vector<500x8xf32>
    %12 = arith.maximumf %10, %11 : vector<500x8xf32>
    %c0_12 = arith.constant 0 : index
    %c0_13 = arith.constant 0 : index
    %13 = vector.load %arg5[%c0_12, %c0_13] : memref<500x8xf32, #tpu.memory_space<vmem>>, vector<500x8xf32>
    tpu.vector_store %arg5[%c0_12, %c0_13], %12 {strides = array<i32>} : memref<500x8xf32, #tpu.memory_space<vmem>>, vector<500x8xf32>,
    return
  }
  func.func @transform_0(%arg0: i32) -> (i32, i32) {
    %c0_i32 = arith.constant 0 : i32
    %c0_i32_0 = arith.constant 0 : i32
    return %arg0, %c0_i32 : i32, i32
  }
  func.func @transform_1(%arg0: i32) -> (i32, i32) {
    %c0_i32 = arith.constant 0 : i32
    %c0_i32_0 = arith.constant 0 : i32
    %c0_i32_1 = arith.constant 0 : i32
    return %c0_i32, %c0_i32_0 : i32, i32
  }
  func.func @transform_2(%arg0: i32) -> (i32, i32) {
    %c0_i32 = arith.constant 0 : i32
    %c0_i32_0 = arith.constant 0 : i32
    %c0_i32_1 = arith.constant 0 : i32
    return %c0_i32, %c0_i32_0 : i32, i32
  }
  func.func @transform_3(%arg0: i32) -> (i32, i32) {
    %c0_i32 = arith.constant 0 : i32
    %c0_i32_0 = arith.constant 0 : i32
    %c0_i32_1 = arith.constant 0 : i32
    return %c0_i32, %c0_i32_0 : i32, i32
  }
  func.func @transform_4(%arg0: i32) -> (i32, i32) {
    %c0_i32 = arith.constant 0 : i32
    %c0_i32_0 = arith.constant 0 : i32
    return %arg0, %c0_i32 : i32, i32
  }
}

</mosaic_0001>

<llo_original>
// kernel: tpu_custom_call.1
$region0: #{tpu_custom_call.1}
  #allocation0 [shape = 'u32[]', space=smem, size = 0x4, offset = 0x4, fixed_abs, tag = 'smem constant byte address 0x4 - core index']
  #allocation1 [shape = 'u32[144,128]{1,0:T(1,128)}', space=vmem, size = 0x12000, scoped, tag = 'internal scratch']
  %s0 = inlined_call_operand.vmem [shape: f32[500,32], index: 0, kind: input, shape index: {}]
  %s1 = inlined_call_operand.vmem [shape: f32[32,32], index: 1, kind: input, shape index: {}]
  %s2 = inlined_call_operand.vmem [shape: f32[32,16], index: 2, kind: input, shape index: {}]
  %s3 = inlined_call_operand.vmem [shape: f32[16,8], index: 3, kind: input, shape index: {}]
  %s4 = inlined_call_operand.vmem [shape: f32[500,8], index: 4, kind: output, shape index: {}]
  %s5 = sld [smem:[#allocation0]]
  $region26: #{tpu_custom_call.1} parent=0
    _
  %s7 = ssub.s32 1, %s5
  %s8 = scalar_select 0, %s7, %s5
  // Predicated region
  $region2: #{tpu_custom_call.1} parent=0 // pred_check
    _
  $region3: #{tpu_custom_call.1} parent=0 // pred_check_branch
    %10 = sbr.rel (0) target = $region5
  $region4: #{tpu_custom_call.1} parent=0 // pred_region
    _
  $region5: #{tpu_custom_call.1} parent=0 // pred_fallthru
    _
  // Predicated region
  $region6: #{tpu_custom_call.1} parent=0 // pred_check
    _
  $region7: #{tpu_custom_call.1} parent=0 // pred_check_branch
    %12 = sbr.rel (0) target = $region9
  $region8: #{tpu_custom_call.1} parent=0 // pred_region
    _
  $region9: #{tpu_custom_call.1} parent=0 // pred_fallthru
    _
  // Predicated region
  $region10: #{tpu_custom_call.1} parent=0 // pred_check
    _
  $region11: #{tpu_custom_call.1} parent=0 // pred_check_branch
    %14 = sbr.rel (0) target = $region13
  $region12: #{tpu_custom_call.1} parent=0 // pred_region
    _
  $region13: #{tpu_custom_call.1} parent=0 // pred_fallthru
    _
  // Predicated region
  $region14: #{tpu_custom_call.1} parent=0 // pred_check
    _
  $region15: #{tpu_custom_call.1} parent=0 // pred_check_branch
    %16 = sbr.rel (0) target = $region17
  $region16: #{tpu_custom_call.1} parent=0 // pred_region
    _
  $region17: #{tpu_custom_call.1} parent=0 // pred_fallthru
    _
  %v17 = vld [vmem:[%s0] sm:$0xff]
  %v18 = vld [vmem:[%s0 + $0x8] sm:$0xff]
  %v19 = vld [vmem:[%s0 + $0x10] sm:$0xff]
  %v20 = vld [vmem:[%s0 + $0x18] sm:$0xff]
  %v21 = vld [vmem:[%s0 + $0x20] sm:$0xff]
  %v22 = vld [vmem:[%s0 + $0x28] sm:$0xff]
  %v23 = vld [vmem:[%s0 + $0x30] sm:$0xff]
  %v24 = vld [vmem:[%s0 + $0x38] sm:$0xff]
  %v25 = vld [vmem:[%s0 + $0x40] sm:$0xff]
  %v26 = vld [vmem:[%s0 + $0x48] sm:$0xff]
  %v27 = vld [vmem:[%s0 + $0x50] sm:$0xff]
  %v28 = vld [vmem:[%s0 + $0x58] sm:$0xff]
  %v29 = vld [vmem:[%s0 + $0x60] sm:$0xff]
  %v30 = vld [vmem:[%s0 + $0x68] sm:$0xff]
  %v31 = vld [vmem:[%s0 + $0x70] sm:$0xff]
  %v32 = vld [vmem:[%s0 + $0x78] sm:$0xff]
  %v33 = vld [vmem:[%s0 + $0x80] sm:$0xff]
  %v34 = vld [vmem:[%s0 + $0x88] sm:$0xff]
  %v35 = vld [vmem:[%s0 + $0x90] sm:$0xff]
  %v36 = vld [vmem:[%s0 + $0x98] sm:$0xff]
  %v37 = vld [vmem:[%s0 + $0xa0] sm:$0xff]
  %v38 = vld [vmem:[%s0 + $0xa8] sm:$0xff]
  %v39 = vld [vmem:[%s0 + $0xb0] sm:$0xff]
  %v40 = vld [vmem:[%s0 + $0xb8] sm:$0xff]
  %v41 = vld [vmem:[%s0 + $0xc0] sm:$0xff]
  %v42 = vld [vmem:[%s0 + $0xc8] sm:$0xff]
  %v43 = vld [vmem:[%s0 + $0xd0] sm:$0xff]
  %v44 = vld [vmem:[%s0 + $0xd8] sm:$0xff]
  %v45 = vld [vmem:[%s0 + $0xe0] sm:$0xff]
  %v46 = vld [vmem:[%s0 + $0xe8] sm:$0xff]
  %v47 = vld [vmem:[%s0 + $0xf0] sm:$0xff]
  %v48 = vld [vmem:[%s0 + $0xf8] sm:$0xff]
  %v49 = vld [vmem:[%s0 + $0x100] sm:$0xff]
  %v50 = vld [vmem:[%s0 + $0x108] sm:$0xff]
  %v51 = vld [vmem:[%s0 + $0x110] sm:$0xff]
  %v52 = vld [vmem:[%s0 + $0x118] sm:$0xff]
  %v53 = vld [vmem:[%s0 + $0x120] sm:$0xff]
  %v54 = vld [vmem:[%s0 + $0x128] sm:$0xff]
  %v55 = vld [vmem:[%s0 + $0x130] sm:$0xff]
  %v56 = vld [vmem:[%s0 + $0x138] sm:$0xff]
  %v57 = vld [vmem:[%s0 + $0x140] sm:$0xff]
  %v58 = vld [vmem:[%s0 + $0x148] sm:$0xff]
  %v59 = vld [vmem:[%s0 + $0x150] sm:$0xff]
  %v60 = vld [vmem:[%s0 + $0x158] sm:$0xff]
  %v61 = vld [vmem:[%s0 + $0x160] sm:$0xff]
  %v62 = vld [vmem:[%s0 + $0x168] sm:$0xff]
  %v63 = vld [vmem:[%s0 + $0x170] sm:$0xff]
  %v64 = vld [vmem:[%s0 + $0x178] sm:$0xff]
  %v65 = vld [vmem:[%s0 + $0x180] sm:$0xff]
  %v66 = vld [vmem:[%s0 + $0x188] sm:$0xff]
  %v67 = vld [vmem:[%s0 + $0x190] sm:$0xff]
  %v68 = vld [vmem:[%s0 + $0x198] sm:$0xff]
  %v69 = vld [vmem:[%s0 + $0x1a0] sm:$0xff]
  %v70 = vld [vmem:[%s0 + $0x1a8] sm:$0xff]
  %v71 = vld [vmem:[%s0 + $0x1b0] sm:$0xff]
  %v72 = vld [vmem:[%s0 + $0x1b8] sm:$0xff]
  %v73 = vld [vmem:[%s0 + $0x1c0] sm:$0xff]
  %v74 = vld [vmem:[%s0 + $0x1c8] sm:$0xff]
  %v75 = vld [vmem:[%s0 + $0x1d0] sm:$0xff]
  %v76 = vld [vmem:[%s0 + $0x1d8] sm:$0xff]
  %v77 = vld [vmem:[%s0 + $0x1e0] sm:$0xff]
  %v78 = vld [vmem:[%s0 + $0x1e8] sm:$0xff]
  %v79 = vld [vmem:[%s0 + $0x1f0] sm:$0xf]
  %v80 = vld [vmem:[%s1] sm:$0xff]
  %v81 = vld [vmem:[%s1 + $0x8] sm:$0xff]
  %v82 = vld [vmem:[%s1 + $0x10] sm:$0xff]
  %v83 = vld [vmem:[%s1 + $0x18] sm:$0xff]
  %vm84 = vcmask 261120
  %v86 = vsel %vm84, %v17, 0
  %v89 = vsel %vm84, %v18, 0
  %v92 = vsel %vm84, %v19, 0
  %v95 = vsel %vm84, %v20, 0
  %v98 = vsel %vm84, %v21, 0
  %v101 = vsel %vm84, %v22, 0
  %v104 = vsel %vm84, %v23, 0
  %v107 = vsel %vm84, %v24, 0
  %v110 = vsel %vm84, %v25, 0
  %v113 = vsel %vm84, %v26, 0
  %v116 = vsel %vm84, %v27, 0
  %v119 = vsel %vm84, %v28, 0
  %v122 = vsel %vm84, %v29, 0
  %v125 = vsel %vm84, %v30, 0
  %v128 = vsel %vm84, %v31, 0
  %v131 = vsel %vm84, %v32, 0
  %v134 = vsel %vm84, %v33, 0
  %v137 = vsel %vm84, %v34, 0
  %v140 = vsel %vm84, %v35, 0
  %v143 = vsel %vm84, %v36, 0
  %v146 = vsel %vm84, %v37, 0
  %v149 = vsel %vm84, %v38, 0
  %v152 = vsel %vm84, %v39, 0
  %v155 = vsel %vm84, %v40, 0
  %v158 = vsel %vm84, %v41, 0
  %v161 = vsel %vm84, %v42, 0
  %v164 = vsel %vm84, %v43, 0
  %v167 = vsel %vm84, %v44, 0
  %v170 = vsel %vm84, %v45, 0
  %v173 = vsel %vm84, %v46, 0
  %v176 = vsel %vm84, %v47, 0
  %v179 = vsel %vm84, %v48, 0
  %v182 = vsel %vm84, %v49, 0
  %v185 = vsel %vm84, %v50, 0
  %v188 = vsel %vm84, %v51, 0
  %v191 = vsel %vm84, %v52, 0
  %v194 = vsel %vm84, %v53, 0
  %v197 = vsel %vm84, %v54, 0
  %v200 = vsel %vm84, %v55, 0
  %v203 = vsel %vm84, %v56, 0
  %v206 = vsel %vm84, %v57, 0
  %v209 = vsel %vm84, %v58, 0
  %v212 = vsel %vm84, %v59, 0
  %v215 = vsel %vm84, %v60, 0
  %v218 = vsel %vm84, %v61, 0
  %v221 = vsel %vm84, %v62, 0
  %v224 = vsel %vm84, %v63, 0
  %v227 = vsel %vm84, %v64, 0
  %v230 = vsel %vm84, %v65, 0
  %v233 = vsel %vm84, %v66, 0
  %v236 = vsel %vm84, %v67, 0
  %v239 = vsel %vm84, %v68, 0
  %v242 = vsel %vm84, %v69, 0
  %v245 = vsel %vm84, %v70, 0
  %v248 = vsel %vm84, %v71, 0
  %v251 = vsel %vm84, %v72, 0
  %v254 = vsel %vm84, %v73, 0
  %v257 = vsel %vm84, %v74, 0
  %v260 = vsel %vm84, %v75, 0
  %v263 = vsel %vm84, %v76, 0
  %v266 = vsel %vm84, %v77, 0
  %v269 = vsel %vm84, %v78, 0
  %v272 = vsel %vm84, %v79, 0
  %274 = vmatprep.subr.mxu0 0.0
  %275 = vmatpush1.msra.mxu0 0.0
  %276 = vmatprep.subr.mxu0 0.0
  %277 = vmatpush1.msra.mxu0 0.0
  %278 = vmatprep.subr.mxu0 0.0
  %279 = vmatpush1.msra.mxu0 0.0
  %280 = vmatprep.subr.mxu0 0.0
  %281 = vmatpush1.msra.mxu0 0.0
  %282 = vmatprep.subr.mxu0 0.0
  %283 = vmatpush1.msra.mxu0 0.0
  %284 = vmatprep.subr.mxu0 0.0
  %285 = vmatpush1.msra.mxu0 0.0
  %286 = vmatprep.subr.mxu0 0.0
  %287 = vmatpush1.msra.mxu0 0.0
  %288 = vmatprep.subr.mxu0 0.0
  %289 = vmatpush1.msra.mxu0 0.0
  %290 = vmatprep.subr.mxu0 0.0
  %291 = vmatpush1.msra.mxu0 0.0
  %292 = vmatprep.subr.mxu0 0.0
  %293 = vmatpush1.msra.mxu0 0.0
  %294 = vmatprep.subr.mxu0 0.0
  %295 = vmatpush1.msra.mxu0 0.0
  %296 = vmatprep.subr.mxu0 0.0
  %297 = vmatpush1.msra.mxu0 0.0
  %298 = vmatprep.subr.mxu0 0.0
  %299 = vmatpush1.msra.mxu0 %v83
  %300 = vmatprep.subr.mxu0 0.0
  %301 = vmatpush1.msra.mxu0 %v82
  %302 = vmatprep.subr.mxu0 0.0
  %303 = vmatpush1.msra.mxu0 %v81
  %304 = vmatprep.subr.mxu0 0.0
  %305 = vmatpush1.msra.mxu0 %v80
  %306 = vmatprep.subr.mxu0 0.0
  %307 = vmatpush2.msra.mxu0 0.0
  %308 = vmatprep.subr.mxu0 0.0
  %309 = vmatpush2.msra.mxu0 0.0
  %310 = vmatprep.subr.mxu0 0.0
  %311 = vmatpush2.msra.mxu0 0.0
  %312 = vmatprep.subr.mxu0 0.0
  %313 = vmatpush2.msra.mxu0 0.0
  %314 = vmatprep.subr.mxu0 0.0
  %315 = vmatpush2.msra.mxu0 0.0
  %316 = vmatprep.subr.mxu0 0.0
  %317 = vmatpush2.msra.mxu0 0.0
  %318 = vmatprep.subr.mxu0 0.0
  %319 = vmatpush2.msra.mxu0 0.0
  %320 = vmatprep.subr.mxu0 0.0
  %321 = vmatpush2.msra.mxu0 0.0
  %322 = vmatprep.subr.mxu0 0.0
  %323 = vmatpush2.msra.mxu0 0.0
  %324 = vmatprep.subr.mxu0 0.0
  %325 = vmatpush2.msra.mxu0 0.0
  %326 = vmatprep.subr.mxu0 0.0
  %327 = vmatpush2.msra.mxu0 0.0
  %328 = vmatprep.subr.mxu0 0.0
  %329 = vmatpush2.msra.mxu0 0.0
  %330 = vmatprep.subr.mxu0 0.0
  %331 = vmatpush2.msra.mxu0 0.0
  %332 = vmatprep.subr.mxu0 0.0
  %333 = vmatpush2.msra.mxu0 0.0
  %334 = vmatprep.subr.mxu0 0.0
  %335 = vmatpush2.msra.mxu0 0.0
  %336 = vmatprep.subr.mxu0 0.0
  %337 = vmatpush2.msra.mxu0 0.0
  %338 = vmatprep.mubr.f32.mxu0 0.0
  %339 = vmatmul.mubr.f32.gmra.mxu0 %v86
  %v340 = vpop.f32.mrf.mxu0
  %v341 = vadd.f32 0.0, %v340
  %v342 = vpop.f32.mrf.mxu0
  %343 = vmatprep.mubr.f32.mxu0 0.0
  %344 = vmatmul.mubr.f32.gmra.mxu0 %v89
  %v345 = vpop.f32.mrf.mxu0
  %v346 = vadd.f32 0.0, %v345
  %v347 = vpop.f32.mrf.mxu0
  %348 = vmatprep.mubr.f32.mxu0 0.0
  %349 = vmatmul.mubr.f32.gmra.mxu0 %v92
  %v350 = vpop.f32.mrf.mxu0
  %v351 = vadd.f32 0.0, %v350
  %v352 = vpop.f32.mrf.mxu0
  %353 = vmatprep.mubr.f32.mxu0 0.0
  %354 = vmatmul.mubr.f32.gmra.mxu0 %v95
  %v355 = vpop.f32.mrf.mxu0
  %v356 = vadd.f32 0.0, %v355
  %v357 = vpop.f32.mrf.mxu0
  %358 = vmatprep.mubr.f32.mxu0 0.0
  %359 = vmatmul.mubr.f32.gmra.mxu0 %v98
  %v360 = vpop.f32.mrf.mxu0
  %v361 = vadd.f32 0.0, %v360
  %v362 = vpop.f32.mrf.mxu0
  %363 = vmatprep.mubr.f32.mxu0 0.0
  %364 = vmatmul.mubr.f32.gmra.mxu0 %v101
  %v365 = vpop.f32.mrf.mxu0
  %v366 = vadd.f32 0.0, %v365
  %v367 = vpop.f32.mrf.mxu0
  %368 = vmatprep.mubr.f32.mxu0 0.0
  %369 = vmatmul.mubr.f32.gmra.mxu0 %v104
  %v370 = vpop.f32.mrf.mxu0
  %v371 = vadd.f32 0.0, %v370
  %v372 = vpop.f32.mrf.mxu0
  %373 = vmatprep.mubr.f32.mxu0 0.0
  %374 = vmatmul.mubr.f32.gmra.mxu0 %v107
  %v375 = vpop.f32.mrf.mxu0
  %v376 = vadd.f32 0.0, %v375
  %v377 = vpop.f32.mrf.mxu0
  %378 = vmatprep.mubr.f32.mxu0 0.0
  %379 = vmatmul.mubr.f32.gmra.mxu0 %v110
  %v380 = vpop.f32.mrf.mxu0
  %v381 = vadd.f32 0.0, %v380
  %v382 = vpop.f32.mrf.mxu0
  %383 = vmatprep.mubr.f32.mxu0 0.0
  %384 = vmatmul.mubr.f32.gmra.mxu0 %v113
  %v385 = vpop.f32.mrf.mxu0
  %v386 = vadd.f32 0.0, %v385
  %v387 = vpop.f32.mrf.mxu0
  %388 = vmatprep.mubr.f32.mxu0 0.0
  %389 = vmatmul.mubr.f32.gmra.mxu0 %v116
  %v390 = vpop.f32.mrf.mxu0
  %v391 = vadd.f32 0.0, %v390
  %v392 = vpop.f32.mrf.mxu0
  %393 = vmatprep.mubr.f32.mxu0 0.0
  %394 = vmatmul.mubr.f32.gmra.mxu0 %v119
  %v395 = vpop.f32.mrf.mxu0
  %v396 = vadd.f32 0.0, %v395
  %v397 = vpop.f32.mrf.mxu0
  %398 = vmatprep.mubr.f32.mxu0 0.0
  %399 = vmatmul.mubr.f32.gmra.mxu0 %v122
  %v400 = vpop.f32.mrf.mxu0
  %v401 = vadd.f32 0.0, %v400
  %v402 = vpop.f32.mrf.mxu0
  %403 = vmatprep.mubr.f32.mxu0 0.0
  %404 = vmatmul.mubr.f32.gmra.mxu0 %v125
  %v405 = vpop.f32.mrf.mxu0
  %v406 = vadd.f32 0.0, %v405
  %v407 = vpop.f32.mrf.mxu0
  %408 = vmatprep.mubr.f32.mxu0 0.0
  %409 = vmatmul.mubr.f32.gmra.mxu0 %v128
  %v410 = vpop.f32.mrf.mxu0
  %v411 = vadd.f32 0.0, %v410
  %v412 = vpop.f32.mrf.mxu0
  %413 = vmatprep.mubr.f32.mxu0 0.0
  %414 = vmatmul.mubr.f32.gmra.mxu0 %v131
  %v415 = vpop.f32.mrf.mxu0
  %v416 = vadd.f32 0.0, %v415
  %v417 = vpop.f32.mrf.mxu0
  %418 = vmatprep.mubr.f32.mxu0 0.0
  %419 = vmatmul.mubr.f32.gmra.mxu0 %v134
  %v420 = vpop.f32.mrf.mxu0
  %v421 = vadd.f32 0.0, %v420
  %v422 = vpop.f32.mrf.mxu0
  %423 = vmatprep.mubr.f32.mxu0 0.0
  %424 = vmatmul.mubr.f32.gmra.mxu0 %v137
  %v425 = vpop.f32.mrf.mxu0
  %v426 = vadd.f32 0.0, %v425
  %v427 = vpop.f32.mrf.mxu0
  %428 = vmatprep.mubr.f32.mxu0 0.0
  %429 = vmatmul.mubr.f32.gmra.mxu0 %v140
  %v430 = vpop.f32.mrf.mxu0
  %v431 = vadd.f32 0.0, %v430
  %v432 = vpop.f32.mrf.mxu0
  %433 = vmatprep.mubr.f32.mxu0 0.0
  %434 = vmatmul.mubr.f32.gmra.mxu0 %v143
  %v435 = vpop.f32.mrf.mxu0
  %v436 = vadd.f32 0.0, %v435
  %v437 = vpop.f32.mrf.mxu0
  %438 = vmatprep.mubr.f32.mxu0 0.0
  %439 = vmatmul.mubr.f32.gmra.mxu0 %v146
  %v440 = vpop.f32.mrf.mxu0
  %v441 = vadd.f32 0.0, %v440
  %v442 = vpop.f32.mrf.mxu0
  %443 = vmatprep.mubr.f32.mxu0 0.0
  %444 = vmatmul.mubr.f32.gmra.mxu0 %v149
  %v445 = vpop.f32.mrf.mxu0
  %v446 = vadd.f32 0.0, %v445
  %v447 = vpop.f32.mrf.mxu0
  %448 = vmatprep.mubr.f32.mxu0 0.0
  %449 = vmatmul.mubr.f32.gmra.mxu0 %v152
  %v450 = vpop.f32.mrf.mxu0
  %v451 = vadd.f32 0.0, %v450
  %v452 = vpop.f32.mrf.mxu0
  %453 = vmatprep.mubr.f32.mxu0 0.0
  %454 = vmatmul.mubr.f32.gmra.mxu0 %v155
  %v455 = vpop.f32.mrf.mxu0
  %v456 = vadd.f32 0.0, %v455
  %v457 = vpop.f32.mrf.mxu0
  %458 = vmatprep.mubr.f32.mxu0 0.0
  %459 = vmatmul.mubr.f32.gmra.mxu0 %v158
  %v460 = vpop.f32.mrf.mxu0
  %v461 = vadd.f32 0.0, %v460
  %v462 = vpop.f32.mrf.mxu0
  %463 = vmatprep.mubr.f32.mxu0 0.0
  %464 = vmatmul.mubr.f32.gmra.mxu0 %v161
  %v465 = vpop.f32.mrf.mxu0
  %v466 = vadd.f32 0.0, %v465
  %v467 = vpop.f32.mrf.mxu0
  %468 = vmatprep.mubr.f32.mxu0 0.0
  %469 = vmatmul.mubr.f32.gmra.mxu0 %v164
  %v470 = vpop.f32.mrf.mxu0
  %v471 = vadd.f32 0.0, %v470
  %v472 = vpop.f32.mrf.mxu0
  %473 = vmatprep.mubr.f32.mxu0 0.0
  %474 = vmatmul.mubr.f32.gmra.mxu0 %v167
  %v475 = vpop.f32.mrf.mxu0
  %v476 = vadd.f32 0.0, %v475
  %v477 = vpop.f32.mrf.mxu0
  %478 = vmatprep.mubr.f32.mxu0 0.0
  %479 = vmatmul.mubr.f32.gmra.mxu0 %v170
  %v480 = vpop.f32.mrf.mxu0
  %v481 = vadd.f32 0.0, %v480
  %v482 = vpop.f32.mrf.mxu0
  %483 = vmatprep.mubr.f32.mxu0 0.0
  %484 = vmatmul.mubr.f32.gmra.mxu0 %v173
  %v485 = vpop.f32.mrf.mxu0
  %v486 = vadd.f32 0.0, %v485
  %v487 = vpop.f32.mrf.mxu0
  %488 = vmatprep.mubr.f32.mxu0 0.0
  %489 = vmatmul.mubr.f32.gmra.mxu0 %v176
  %v490 = vpop.f32.mrf.mxu0
  %v491 = vadd.f32 0.0, %v490
  %v492 = vpop.f32.mrf.mxu0
  %493 = vmatprep.mubr.f32.mxu0 0.0
  %494 = vmatmul.mubr.f32.gmra.mxu0 %v179
  %v495 = vpop.f32.mrf.mxu0
  %v496 = vadd.f32 0.0, %v495
  %v497 = vpop.f32.mrf.mxu0
  %498 = vmatprep.mubr.f32.mxu0 0.0
  %499 = vmatmul.mubr.f32.gmra.mxu0 %v182
  %v500 = vpop.f32.mrf.mxu0
  %v501 = vadd.f32 0.0, %v500
  %v502 = vpop.f32.mrf.mxu0
  %503 = vmatprep.mubr.f32.mxu0 0.0
  %504 = vmatmul.mubr.f32.gmra.mxu0 %v185
  %v505 = vpop.f32.mrf.mxu0
  %v506 = vadd.f32 0.0, %v505
  %v507 = vpop.f32.mrf.mxu0
  %508 = vmatprep.mubr.f32.mxu0 0.0
  %509 = vmatmul.mubr.f32.gmra.mxu0 %v188
  %v510 = vpop.f32.mrf.mxu0
  %v511 = vadd.f32 0.0, %v510
  %v512 = vpop.f32.mrf.mxu0
  %513 = vmatprep.mubr.f32.mxu0 0.0
  %514 = vmatmul.mubr.f32.gmra.mxu0 %v191
  %v515 = vpop.f32.mrf.mxu0
  %v516 = vadd.f32 0.0, %v515
  %v517 = vpop.f32.mrf.mxu0
  %518 = vmatprep.mubr.f32.mxu0 0.0
  %519 = vmatmul.mubr.f32.gmra.mxu0 %v194
  %v520 = vpop.f32.mrf.mxu0
  %v521 = vadd.f32 0.0, %v520
  %v522 = vpop.f32.mrf.mxu0
  %523 = vmatprep.mubr.f32.mxu0 0.0
  %524 = vmatmul.mubr.f32.gmra.mxu0 %v197
  %v525 = vpop.f32.mrf.mxu0
  %v526 = vadd.f32 0.0, %v525
  %v527 = vpop.f32.mrf.mxu0
  %528 = vmatprep.mubr.f32.mxu0 0.0
  %529 = vmatmul.mubr.f32.gmra.mxu0 %v200
  %v530 = vpop.f32.mrf.mxu0
  %v531 = vadd.f32 0.0, %v530
  %v532 = vpop.f32.mrf.mxu0
  %533 = vmatprep.mubr.f32.mxu0 0.0
  %534 = vmatmul.mubr.f32.gmra.mxu0 %v203
  %v535 = vpop.f32.mrf.mxu0
  %v536 = vadd.f32 0.0, %v535
  %v537 = vpop.f32.mrf.mxu0
  %538 = vmatprep.mubr.f32.mxu0 0.0
  %539 = vmatmul.mubr.f32.gmra.mxu0 %v206
  %v540 = vpop.f32.mrf.mxu0
  %v541 = vadd.f32 0.0, %v540
  %v542 = vpop.f32.mrf.mxu0
  %543 = vmatprep.mubr.f32.mxu0 0.0
  %544 = vmatmul.mubr.f32.gmra.mxu0 %v209
  %v545 = vpop.f32.mrf.mxu0
  %v546 = vadd.f32 0.0, %v545
  %v547 = vpop.f32.mrf.mxu0
  %548 = vmatprep.mubr.f32.mxu0 0.0
  %549 = vmatmul.mubr.f32.gmra.mxu0 %v212
  %v550 = vpop.f32.mrf.mxu0
  %v551 = vadd.f32 0.0, %v550
  %v552 = vpop.f32.mrf.mxu0
  %553 = vmatprep.mubr.f32.mxu0 0.0
  %554 = vmatmul.mubr.f32.gmra.mxu0 %v215
  %v555 = vpop.f32.mrf.mxu0
  %v556 = vadd.f32 0.0, %v555
  %v557 = vpop.f32.mrf.mxu0
  %558 = vmatprep.mubr.f32.mxu0 0.0
  %559 = vmatmul.mubr.f32.gmra.mxu0 %v218
  %v560 = vpop.f32.mrf.mxu0
  %v561 = vadd.f32 0.0, %v560
  %v562 = vpop.f32.mrf.mxu0
  %563 = vmatprep.mubr.f32.mxu0 0.0
  %564 = vmatmul.mubr.f32.gmra.mxu0 %v221
  %v565 = vpop.f32.mrf.mxu0
  %v566 = vadd.f32 0.0, %v565
  %v567 = vpop.f32.mrf.mxu0
  %568 = vmatprep.mubr.f32.mxu0 0.0
  %569 = vmatmul.mubr.f32.gmra.mxu0 %v224
  %v570 = vpop.f32.mrf.mxu0
  %v571 = vadd.f32 0.0, %v570
  %v572 = vpop.f32.mrf.mxu0
  %573 = vmatprep.mubr.f32.mxu0 0.0
  %574 = vmatmul.mubr.f32.gmra.mxu0 %v227
  %v575 = vpop.f32.mrf.mxu0
  %v576 = vadd.f32 0.0, %v575
  %v577 = vpop.f32.mrf.mxu0
  %578 = vmatprep.mubr.f32.mxu0 0.0
  %579 = vmatmul.mubr.f32.gmra.mxu0 %v230
  %v580 = vpop.f32.mrf.mxu0
  %v581 = vadd.f32 0.0, %v580
  %v582 = vpop.f32.mrf.mxu0
  %583 = vmatprep.mubr.f32.mxu0 0.0
  %584 = vmatmul.mubr.f32.gmra.mxu0 %v233
  %v585 = vpop.f32.mrf.mxu0
  %v586 = vadd.f32 0.0, %v585
  %v587 = vpop.f32.mrf.mxu0
  %588 = vmatprep.mubr.f32.mxu0 0.0
  %589 = vmatmul.mubr.f32.gmra.mxu0 %v236
  %v590 = vpop.f32.mrf.mxu0
  %v591 = vadd.f32 0.0, %v590
  %v592 = vpop.f32.mrf.mxu0
  %593 = vmatprep.mubr.f32.mxu0 0.0
  %594 = vmatmul.mubr.f32.gmra.mxu0 %v239
  %v595 = vpop.f32.mrf.mxu0
  %v596 = vadd.f32 0.0, %v595
  %v597 = vpop.f32.mrf.mxu0
  %598 = vmatprep.mubr.f32.mxu0 0.0
  %599 = vmatmul.mubr.f32.gmra.mxu0 %v242
  %v600 = vpop.f32.mrf.mxu0
  %v601 = vadd.f32 0.0, %v600
  %v602 = vpop.f32.mrf.mxu0
  %603 = vmatprep.mubr.f32.mxu0 0.0
  %604 = vmatmul.mubr.f32.gmra.mxu0 %v245
  %v605 = vpop.f32.mrf.mxu0
  %v606 = vadd.f32 0.0, %v605
  %v607 = vpop.f32.mrf.mxu0
  %608 = vmatprep.mubr.f32.mxu0 0.0
  %609 = vmatmul.mubr.f32.gmra.mxu0 %v248
  %v610 = vpop.f32.mrf.mxu0
  %v611 = vadd.f32 0.0, %v610
  %v612 = vpop.f32.mrf.mxu0
  %613 = vmatprep.mubr.f32.mxu0 0.0
  %614 = vmatmul.mubr.f32.gmra.mxu0 %v251
  %v615 = vpop.f32.mrf.mxu0
  %v616 = vadd.f32 0.0, %v615
  %v617 = vpop.f32.mrf.mxu0
  %618 = vmatprep.mubr.f32.mxu0 0.0
  %619 = vmatmul.mubr.f32.gmra.mxu0 %v254
  %v620 = vpop.f32.mrf.mxu0
  %v621 = vadd.f32 0.0, %v620
  %v622 = vpop.f32.mrf.mxu0
  %623 = vmatprep.mubr.f32.mxu0 0.0
  %624 = vmatmul.mubr.f32.gmra.mxu0 %v257
  %v625 = vpop.f32.mrf.mxu0
  %v626 = vadd.f32 0.0, %v625
  %v627 = vpop.f32.mrf.mxu0
  %628 = vmatprep.mubr.f32.mxu0 0.0
  %629 = vmatmul.mubr.f32.gmra.mxu0 %v260
  %v630 = vpop.f32.mrf.mxu0
  %v631 = vadd.f32 0.0, %v630
  %v632 = vpop.f32.mrf.mxu0
  %633 = vmatprep.mubr.f32.mxu0 0.0
  %634 = vmatmul.mubr.f32.gmra.mxu0 %v263
  %v635 = vpop.f32.mrf.mxu0
  %v636 = vadd.f32 0.0, %v635
  %v637 = vpop.f32.mrf.mxu0
  %638 = vmatprep.mubr.f32.mxu0 0.0
  %639 = vmatmul.mubr.f32.gmra.mxu0 %v266
  %v640 = vpop.f32.mrf.mxu0
  %v641 = vadd.f32 0.0, %v640
  %v642 = vpop.f32.mrf.mxu0
  %643 = vmatprep.mubr.f32.mxu0 0.0
  %644 = vmatmul.mubr.f32.gmra.mxu0 %v269
  %v645 = vpop.f32.mrf.mxu0
  %v646 = vadd.f32 0.0, %v645
  %v647 = vpop.f32.mrf.mxu0
  %648 = vmatprep.mubr.f32.mxu0 0.0
  %649 = vmatmul.mubr.f32.gmra.mxu0 %v272
  %v650 = vpop.f32.mrf.mxu0
  %v651 = vadd.f32 0.0, %v650
  %v652 = vpop.f32.mrf.mxu0
  %653 = vdwg.mxu0
  %v654 = vmax.f32 %v341, 0.0
  %v655 = vmax.f32 %v346, 0.0
  %v656 = vmax.f32 %v351, 0.0
  %v657 = vmax.f32 %v356, 0.0
  %v658 = vmax.f32 %v361, 0.0
  %v659 = vmax.f32 %v366, 0.0
  %v660 = vmax.f32 %v371, 0.0
  %v661 = vmax.f32 %v376, 0.0
  %v662 = vmax.f32 %v381, 0.0
  %v663 = vmax.f32 %v386, 0.0
  %v664 = vmax.f32 %v391, 0.0
  %v665 = vmax.f32 %v396, 0.0
  %v666 = vmax.f32 %v401, 0.0
  %v667 = vmax.f32 %v406, 0.0
  %v668 = vmax.f32 %v411, 0.0
  %v669 = vmax.f32 %v416, 0.0
  %v670 = vmax.f32 %v421, 0.0
  %v671 = vmax.f32 %v426, 0.0
  %v672 = vmax.f32 %v431, 0.0
  %v673 = vmax.f32 %v436, 0.0
  %v674 = vmax.f32 %v441, 0.0
  %v675 = vmax.f32 %v446, 0.0
  %v676 = vmax.f32 %v451, 0.0
  %v677 = vmax.f32 %v456, 0.0
  %v678 = vmax.f32 %v461, 0.0
  %v679 = vmax.f32 %v466, 0.0
  %v680 = vmax.f32 %v471, 0.0
  %v681 = vmax.f32 %v476, 0.0
  %v682 = vmax.f32 %v481, 0.0
  %v683 = vmax.f32 %v486, 0.0
  %v684 = vmax.f32 %v491, 0.0
  %v685 = vmax.f32 %v496, 0.0
  %v686 = vmax.f32 %v501, 0.0
  %v687 = vmax.f32 %v506, 0.0
  %v688 = vmax.f32 %v511, 0.0
  %v689 = vmax.f32 %v516, 0.0
  %v690 = vmax.f32 %v521, 0.0
  %v691 = vmax.f32 %v526, 0.0
  %v692 = vmax.f32 %v531, 0.0
  %v693 = vmax.f32 %v536, 0.0
  %v694 = vmax.f32 %v541, 0.0
  %v695 = vmax.f32 %v546, 0.0
  %v696 = vmax.f32 %v551, 0.0
  %v697 = vmax.f32 %v556, 0.0
  %v698 = vmax.f32 %v561, 0.0
  %v699 = vmax.f32 %v566, 0.0
  %v700 = vmax.f32 %v571, 0.0
  %v701 = vmax.f32 %v576, 0.0
  %v702 = vmax.f32 %v581, 0.0
  %v703 = vmax.f32 %v586, 0.0
  %v704 = vmax.f32 %v591, 0.0
  %v705 = vmax.f32 %v596, 0.0
  %v706 = vmax.f32 %v601, 0.0
  %v707 = vmax.f32 %v606, 0.0
  %v708 = vmax.f32 %v611, 0.0
  %v709 = vmax.f32 %v616, 0.0
  %v710 = vmax.f32 %v621, 0.0
  %v711 = vmax.f32 %v626, 0.0
  %v712 = vmax.f32 %v631, 0.0
  %v713 = vmax.f32 %v636, 0.0
  %v714 = vmax.f32 %v641, 0.0
  %v715 = vmax.f32 %v646, 0.0
  %v716 = vmax.f32 %v651, 0.0
  %v717 = vld [vmem:[%s2] sm:$0xff]
  %v718 = vld [vmem:[%s2 + $0x8] sm:$0xff]
  %v719 = vld [vmem:[%s2 + $0x10] sm:$0xff]
  %v720 = vld [vmem:[%s2 + $0x18] sm:$0xff]
  %v722 = vsel %vm84, %v654, 0
  %v725 = vsel %vm84, %v655, 0
  %v728 = vsel %vm84, %v656, 0
  %v731 = vsel %vm84, %v657, 0
  %v734 = vsel %vm84, %v658, 0
  %v737 = vsel %vm84, %v659, 0
  %v740 = vsel %vm84, %v660, 0
  %v743 = vsel %vm84, %v661, 0
  %v746 = vsel %vm84, %v662, 0
  %v749 = vsel %vm84, %v663, 0
  %v752 = vsel %vm84, %v664, 0
  %v755 = vsel %vm84, %v665, 0
  %v758 = vsel %vm84, %v666, 0
  %v761 = vsel %vm84, %v667, 0
  %v764 = vsel %vm84, %v668, 0
  %v767 = vsel %vm84, %v669, 0
  %v770 = vsel %vm84, %v670, 0
  %v773 = vsel %vm84, %v671, 0
  %v776 = vsel %vm84, %v672, 0
  %v779 = vsel %vm84, %v673, 0
  %v782 = vsel %vm84, %v674, 0
  %v785 = vsel %vm84, %v675, 0
  %v788 = vsel %vm84, %v676, 0
  %v791 = vsel %vm84, %v677, 0
  %v794 = vsel %vm84, %v678, 0
  %v797 = vsel %vm84, %v679, 0
  %v800 = vsel %vm84, %v680, 0
  %v803 = vsel %vm84, %v681, 0
  %v806 = vsel %vm84, %v682, 0
  %v809 = vsel %vm84, %v683, 0
  %v812 = vsel %vm84, %v684, 0
  %v815 = vsel %vm84, %v685, 0
  %v818 = vsel %vm84, %v686, 0
  %v821 = vsel %vm84, %v687, 0
  %v824 = vsel %vm84, %v688, 0
  %v827 = vsel %vm84, %v689, 0
  %v830 = vsel %vm84, %v690, 0
  %v833 = vsel %vm84, %v691, 0
  %v836 = vsel %vm84, %v692, 0
  %v839 = vsel %vm84, %v693, 0
  %v842 = vsel %vm84, %v694, 0
  %v845 = vsel %vm84, %v695, 0
  %v848 = vsel %vm84, %v696, 0
  %v851 = vsel %vm84, %v697, 0
  %v854 = vsel %vm84, %v698, 0
  %v857 = vsel %vm84, %v699, 0
  %v860 = vsel %vm84, %v700, 0
  %v863 = vsel %vm84, %v701, 0
  %v866 = vsel %vm84, %v702, 0
  %v869 = vsel %vm84, %v703, 0
  %v872 = vsel %vm84, %v704, 0
  %v875 = vsel %vm84, %v705, 0
  %v878 = vsel %vm84, %v706, 0
  %v881 = vsel %vm84, %v707, 0
  %v884 = vsel %vm84, %v708, 0
  %v887 = vsel %vm84, %v709, 0
  %v890 = vsel %vm84, %v710, 0
  %v893 = vsel %vm84, %v711, 0
  %v896 = vsel %vm84, %v712, 0
  %v899 = vsel %vm84, %v713, 0
  %v902 = vsel %vm84, %v714, 0
  %v905 = vsel %vm84, %v715, 0
  %v908 = vsel %vm84, %v716, 0
  %910 = vmatprep.subr.mxu0 0.0
  %911 = vmatpush1.msra.mxu0 0.0
  %912 = vmatprep.subr.mxu0 0.0
  %913 = vmatpush1.msra.mxu0 0.0
  %914 = vmatprep.subr.mxu0 0.0
  %915 = vmatpush1.msra.mxu0 0.0
  %916 = vmatprep.subr.mxu0 0.0
  %917 = vmatpush1.msra.mxu0 0.0
  %918 = vmatprep.subr.mxu0 0.0
  %919 = vmatpush1.msra.mxu0 0.0
  %920 = vmatprep.subr.mxu0 0.0
  %921 = vmatpush1.msra.mxu0 0.0
  %922 = vmatprep.subr.mxu0 0.0
  %923 = vmatpush1.msra.mxu0 0.0
  %924 = vmatprep.subr.mxu0 0.0
  %925 = vmatpush1.msra.mxu0 0.0
  %926 = vmatprep.subr.mxu0 0.0
  %927 = vmatpush1.msra.mxu0 0.0
  %928 = vmatprep.subr.mxu0 0.0
  %929 = vmatpush1.msra.mxu0 0.0
  %930 = vmatprep.subr.mxu0 0.0
  %931 = vmatpush1.msra.mxu0 0.0
  %932 = vmatprep.subr.mxu0 0.0
  %933 = vmatpush1.msra.mxu0 0.0
  %934 = vmatprep.subr.mxu0 0.0
  %935 = vmatpush1.msra.mxu0 %v720
  %936 = vmatprep.subr.mxu0 0.0
  %937 = vmatpush1.msra.mxu0 %v719
  %938 = vmatprep.subr.mxu0 0.0
  %939 = vmatpush1.msra.mxu0 %v718
  %940 = vmatprep.subr.mxu0 0.0
  %941 = vmatpush1.msra.mxu0 %v717
  %942 = vmatprep.subr.mxu0 0.0
  %943 = vmatpush2.msra.mxu0 0.0
  %944 = vmatprep.subr.mxu0 0.0
  %945 = vmatpush2.msra.mxu0 0.0
  %946 = vmatprep.subr.mxu0 0.0
  %947 = vmatpush2.msra.mxu0 0.0
  %948 = vmatprep.subr.mxu0 0.0
  %949 = vmatpush2.msra.mxu0 0.0
  %950 = vmatprep.subr.mxu0 0.0
  %951 = vmatpush2.msra.mxu0 0.0
  %952 = vmatprep.subr.mxu0 0.0
  %953 = vmatpush2.msra.mxu0 0.0
  %954 = vmatprep.subr.mxu0 0.0
  %955 = vmatpush2.msra.mxu0 0.0
  %956 = vmatprep.subr.mxu0 0.0
  %957 = vmatpush2.msra.mxu0 0.0
  %958 = vmatprep.subr.mxu0 0.0
  %959 = vmatpush2.msra.mxu0 0.0
  %960 = vmatprep.subr.mxu0 0.0
  %961 = vmatpush2.msra.mxu0 0.0
  %962 = vmatprep.subr.mxu0 0.0
  %963 = vmatpush2.msra.mxu0 0.0
  %964 = vmatprep.subr.mxu0 0.0
  %965 = vmatpush2.msra.mxu0 0.0
  %966 = vmatprep.subr.mxu0 0.0
  %967 = vmatpush2.msra.mxu0 0.0
  %968 = vmatprep.subr.mxu0 0.0
  %969 = vmatpush2.msra.mxu0 0.0
  %970 = vmatprep.subr.mxu0 0.0
  %971 = vmatpush2.msra.mxu0 0.0
  %972 = vmatprep.subr.mxu0 0.0
  %973 = vmatpush2.msra.mxu0 0.0
  %974 = vmatprep.mubr.f32.mxu0 0.0
  %975 = vmatmul.mubr.f32.gmra.mxu0 %v722
  %v976 = vpop.f32.mrf.mxu0
  %v977 = vadd.f32 0.0, %v976
  %v978 = vpop.f32.mrf.mxu0
  %979 = vmatprep.mubr.f32.mxu0 0.0
  %980 = vmatmul.mubr.f32.gmra.mxu0 %v725
  %v981 = vpop.f32.mrf.mxu0
  %v982 = vadd.f32 0.0, %v981
  %v983 = vpop.f32.mrf.mxu0
  %984 = vmatprep.mubr.f32.mxu0 0.0
  %985 = vmatmul.mubr.f32.gmra.mxu0 %v728
  %v986 = vpop.f32.mrf.mxu0
  %v987 = vadd.f32 0.0, %v986
  %v988 = vpop.f32.mrf.mxu0
  %989 = vmatprep.mubr.f32.mxu0 0.0
  %990 = vmatmul.mubr.f32.gmra.mxu0 %v731
  %v991 = vpop.f32.mrf.mxu0
  %v992 = vadd.f32 0.0, %v991
  %v993 = vpop.f32.mrf.mxu0
  %994 = vmatprep.mubr.f32.mxu0 0.0
  %995 = vmatmul.mubr.f32.gmra.mxu0 %v734
  %v996 = vpop.f32.mrf.mxu0
  %v997 = vadd.f32 0.0, %v996
  %v998 = vpop.f32.mrf.mxu0
  %999 = vmatprep.mubr.f32.mxu0 0.0
  %1000 = vmatmul.mubr.f32.gmra.mxu0 %v737
  %v1001 = vpop.f32.mrf.mxu0
  %v1002 = vadd.f32 0.0, %v1001
  %v1003 = vpop.f32.mrf.mxu0
  %1004 = vmatprep.mubr.f32.mxu0 0.0
  %1005 = vmatmul.mubr.f32.gmra.mxu0 %v740
  %v1006 = vpop.f32.mrf.mxu0
  %v1007 = vadd.f32 0.0, %v1006
  %v1008 = vpop.f32.mrf.mxu0
  %1009 = vmatprep.mubr.f32.mxu0 0.0
  %1010 = vmatmul.mubr.f32.gmra.mxu0 %v743
  %v1011 = vpop.f32.mrf.mxu0
  %v1012 = vadd.f32 0.0, %v1011
  %v1013 = vpop.f32.mrf.mxu0
  %1014 = vmatprep.mubr.f32.mxu0 0.0
  %1015 = vmatmul.mubr.f32.gmra.mxu0 %v746
  %v1016 = vpop.f32.mrf.mxu0
  %v1017 = vadd.f32 0.0, %v1016
  %v1018 = vpop.f32.mrf.mxu0
  %1019 = vmatprep.mubr.f32.mxu0 0.0
  %1020 = vmatmul.mubr.f32.gmra.mxu0 %v749
  %v1021 = vpop.f32.mrf.mxu0
  %v1022 = vadd.f32 0.0, %v1021
  %v1023 = vpop.f32.mrf.mxu0
  %1024 = vmatprep.mubr.f32.mxu0 0.0
  %1025 = vmatmul.mubr.f32.gmra.mxu0 %v752
  %v1026 = vpop.f32.mrf.mxu0
  %v1027 = vadd.f32 0.0, %v1026
  %v1028 = vpop.f32.mrf.mxu0
  %1029 = vmatprep.mubr.f32.mxu0 0.0
  %1030 = vmatmul.mubr.f32.gmra.mxu0 %v755
  %v1031 = vpop.f32.mrf.mxu0
  %v1032 = vadd.f32 0.0, %v1031
  %v1033 = vpop.f32.mrf.mxu0
  %1034 = vmatprep.mubr.f32.mxu0 0.0
  %1035 = vmatmul.mubr.f32.gmra.mxu0 %v758
  %v1036 = vpop.f32.mrf.mxu0
  %v1037 = vadd.f32 0.0, %v1036
  %v1038 = vpop.f32.mrf.mxu0
  %1039 = vmatprep.mubr.f32.mxu0 0.0
  %1040 = vmatmul.mubr.f32.gmra.mxu0 %v761
  %v1041 = vpop.f32.mrf.mxu0
  %v1042 = vadd.f32 0.0, %v1041
  %v1043 = vpop.f32.mrf.mxu0
  %1044 = vmatprep.mubr.f32.mxu0 0.0
  %1045 = vmatmul.mubr.f32.gmra.mxu0 %v764
  %v1046 = vpop.f32.mrf.mxu0
  %v1047 = vadd.f32 0.0, %v1046
  %v1048 = vpop.f32.mrf.mxu0
  %1049 = vmatprep.mubr.f32.mxu0 0.0
  %1050 = vmatmul.mubr.f32.gmra.mxu0 %v767
  %v1051 = vpop.f32.mrf.mxu0
  %v1052 = vadd.f32 0.0, %v1051
  %v1053 = vpop.f32.mrf.mxu0
  %1054 = vmatprep.mubr.f32.mxu0 0.0
  %1055 = vmatmul.mubr.f32.gmra.mxu0 %v770
  %v1056 = vpop.f32.mrf.mxu0
  %v1057 = vadd.f32 0.0, %v1056
  %v1058 = vpop.f32.mrf.mxu0
  %1059 = vmatprep.mubr.f32.mxu0 0.0
  %1060 = vmatmul.mubr.f32.gmra.mxu0 %v773
  %v1061 = vpop.f32.mrf.mxu0
  %v1062 = vadd.f32 0.0, %v1061
  %v1063 = vpop.f32.mrf.mxu0
  %1064 = vmatprep.mubr.f32.mxu0 0.0
  %1065 = vmatmul.mubr.f32.gmra.mxu0 %v776
  %v1066 = vpop.f32.mrf.mxu0
  %v1067 = vadd.f32 0.0, %v1066
  %v1068 = vpop.f32.mrf.mxu0
  %1069 = vmatprep.mubr.f32.mxu0 0.0
  %1070 = vmatmul.mubr.f32.gmra.mxu0 %v779
  %v1071 = vpop.f32.mrf.mxu0
  %v1072 = vadd.f32 0.0, %v1071
  %v1073 = vpop.f32.mrf.mxu0
  %1074 = vmatprep.mubr.f32.mxu0 0.0
  %1075 = vmatmul.mubr.f32.gmra.mxu0 %v782
  %v1076 = vpop.f32.mrf.mxu0
  %v1077 = vadd.f32 0.0, %v1076
  %v1078 = vpop.f32.mrf.mxu0
  %1079 = vmatprep.mubr.f32.mxu0 0.0
  %1080 = vmatmul.mubr.f32.gmra.mxu0 %v785
  %v1081 = vpop.f32.mrf.mxu0
  %v1082 = vadd.f32 0.0, %v1081
  %v1083 = vpop.f32.mrf.mxu0
  %1084 = vmatprep.mubr.f32.mxu0 0.0
  %1085 = vmatmul.mubr.f32.gmra.mxu0 %v788
  %v1086 = vpop.f32.mrf.mxu0
  %v1087 = vadd.f32 0.0, %v1086
  %v1088 = vpop.f32.mrf.mxu0
  %1089 = vmatprep.mubr.f32.mxu0 0.0
  %1090 = vmatmul.mubr.f32.gmra.mxu0 %v791
  %v1091 = vpop.f32.mrf.mxu0
  %v1092 = vadd.f32 0.0, %v1091
  %v1093 = vpop.f32.mrf.mxu0
  %1094 = vmatprep.mubr.f32.mxu0 0.0
  %1095 = vmatmul.mubr.f32.gmra.mxu0 %v794
  %v1096 = vpop.f32.mrf.mxu0
  %v1097 = vadd.f32 0.0, %v1096
  %v1098 = vpop.f32.mrf.mxu0
  %1099 = vmatprep.mubr.f32.mxu0 0.0
  %1100 = vmatmul.mubr.f32.gmra.mxu0 %v797
  %v1101 = vpop.f32.mrf.mxu0
  %v1102 = vadd.f32 0.0, %v1101
  %v1103 = vpop.f32.mrf.mxu0
  %1104 = vmatprep.mubr.f32.mxu0 0.0
  %1105 = vmatmul.mubr.f32.gmra.mxu0 %v800
  %v1106 = vpop.f32.mrf.mxu0
  %v1107 = vadd.f32 0.0, %v1106
  %v1108 = vpop.f32.mrf.mxu0
  %1109 = vmatprep.mubr.f32.mxu0 0.0
  %1110 = vmatmul.mubr.f32.gmra.mxu0 %v803
  %v1111 = vpop.f32.mrf.mxu0
  %v1112 = vadd.f32 0.0, %v1111
  %v1113 = vpop.f32.mrf.mxu0
  %1114 = vmatprep.mubr.f32.mxu0 0.0
  %1115 = vmatmul.mubr.f32.gmra.mxu0 %v806
  %v1116 = vpop.f32.mrf.mxu0
  %v1117 = vadd.f32 0.0, %v1116
  %v1118 = vpop.f32.mrf.mxu0
  %1119 = vmatprep.mubr.f32.mxu0 0.0
  %1120 = vmatmul.mubr.f32.gmra.mxu0 %v809
  %v1121 = vpop.f32.mrf.mxu0
  %v1122 = vadd.f32 0.0, %v1121
  %v1123 = vpop.f32.mrf.mxu0
  %1124 = vmatprep.mubr.f32.mxu0 0.0
  %1125 = vmatmul.mubr.f32.gmra.mxu0 %v812
  %v1126 = vpop.f32.mrf.mxu0
  %v1127 = vadd.f32 0.0, %v1126
  %v1128 = vpop.f32.mrf.mxu0
  %1129 = vmatprep.mubr.f32.mxu0 0.0
  %1130 = vmatmul.mubr.f32.gmra.mxu0 %v815
  %v1131 = vpop.f32.mrf.mxu0
  %v1132 = vadd.f32 0.0, %v1131
  %v1133 = vpop.f32.mrf.mxu0
  %1134 = vmatprep.mubr.f32.mxu0 0.0
  %1135 = vmatmul.mubr.f32.gmra.mxu0 %v818
  %v1136 = vpop.f32.mrf.mxu0
  %v1137 = vadd.f32 0.0, %v1136
  %v1138 = vpop.f32.mrf.mxu0
  %1139 = vmatprep.mubr.f32.mxu0 0.0
  %1140 = vmatmul.mubr.f32.gmra.mxu0 %v821
  %v1141 = vpop.f32.mrf.mxu0
  %v1142 = vadd.f32 0.0, %v1141
  %v1143 = vpop.f32.mrf.mxu0
  %1144 = vmatprep.mubr.f32.mxu0 0.0
  %1145 = vmatmul.mubr.f32.gmra.mxu0 %v824
  %v1146 = vpop.f32.mrf.mxu0
  %v1147 = vadd.f32 0.0, %v1146
  %v1148 = vpop.f32.mrf.mxu0
  %1149 = vmatprep.mubr.f32.mxu0 0.0
  %1150 = vmatmul.mubr.f32.gmra.mxu0 %v827
  %v1151 = vpop.f32.mrf.mxu0
  %v1152 = vadd.f32 0.0, %v1151
  %v1153 = vpop.f32.mrf.mxu0
  %1154 = vmatprep.mubr.f32.mxu0 0.0
  %1155 = vmatmul.mubr.f32.gmra.mxu0 %v830
  %v1156 = vpop.f32.mrf.mxu0
  %v1157 = vadd.f32 0.0, %v1156
  %v1158 = vpop.f32.mrf.mxu0
  %1159 = vmatprep.mubr.f32.mxu0 0.0
  %1160 = vmatmul.mubr.f32.gmra.mxu0 %v833
  %v1161 = vpop.f32.mrf.mxu0
  %v1162 = vadd.f32 0.0, %v1161
  %v1163 = vpop.f32.mrf.mxu0
  %1164 = vmatprep.mubr.f32.mxu0 0.0
  %1165 = vmatmul.mubr.f32.gmra.mxu0 %v836
  %v1166 = vpop.f32.mrf.mxu0
  %v1167 = vadd.f32 0.0, %v1166
  %v1168 = vpop.f32.mrf.mxu0
  %1169 = vmatprep.mubr.f32.mxu0 0.0
  %1170 = vmatmul.mubr.f32.gmra.mxu0 %v839
  %v1171 = vpop.f32.mrf.mxu0
  %v1172 = vadd.f32 0.0, %v1171
  %v1173 = vpop.f32.mrf.mxu0
  %1174 = vmatprep.mubr.f32.mxu0 0.0
  %1175 = vmatmul.mubr.f32.gmra.mxu0 %v842
  %v1176 = vpop.f32.mrf.mxu0
  %v1177 = vadd.f32 0.0, %v1176
  %v1178 = vpop.f32.mrf.mxu0
  %1179 = vmatprep.mubr.f32.mxu0 0.0
  %1180 = vmatmul.mubr.f32.gmra.mxu0 %v845
  %v1181 = vpop.f32.mrf.mxu0
  %v1182 = vadd.f32 0.0, %v1181
  %v1183 = vpop.f32.mrf.mxu0
  %1184 = vmatprep.mubr.f32.mxu0 0.0
  %1185 = vmatmul.mubr.f32.gmra.mxu0 %v848
  %v1186 = vpop.f32.mrf.mxu0
  %v1187 = vadd.f32 0.0, %v1186
  %v1188 = vpop.f32.mrf.mxu0
  %1189 = vmatprep.mubr.f32.mxu0 0.0
  %1190 = vmatmul.mubr.f32.gmra.mxu0 %v851
  %v1191 = vpop.f32.mrf.mxu0
  %v1192 = vadd.f32 0.0, %v1191
  %v1193 = vpop.f32.mrf.mxu0
  %1194 = vmatprep.mubr.f32.mxu0 0.0
  %1195 = vmatmul.mubr.f32.gmra.mxu0 %v854
  %v1196 = vpop.f32.mrf.mxu0
  %v1197 = vadd.f32 0.0, %v1196
  %v1198 = vpop.f32.mrf.mxu0
  %1199 = vmatprep.mubr.f32.mxu0 0.0
  %1200 = vmatmul.mubr.f32.gmra.mxu0 %v857
  %v1201 = vpop.f32.mrf.mxu0
  %v1202 = vadd.f32 0.0, %v1201
  %v1203 = vpop.f32.mrf.mxu0
  %1204 = vmatprep.mubr.f32.mxu0 0.0
  %1205 = vmatmul.mubr.f32.gmra.mxu0 %v860
  %v1206 = vpop.f32.mrf.mxu0
  %v1207 = vadd.f32 0.0, %v1206
  %v1208 = vpop.f32.mrf.mxu0
  %1209 = vmatprep.mubr.f32.mxu0 0.0
  %1210 = vmatmul.mubr.f32.gmra.mxu0 %v863
  %v1211 = vpop.f32.mrf.mxu0
  %v1212 = vadd.f32 0.0, %v1211
  %v1213 = vpop.f32.mrf.mxu0
  %1214 = vmatprep.mubr.f32.mxu0 0.0
  %1215 = vmatmul.mubr.f32.gmra.mxu0 %v866
  %v1216 = vpop.f32.mrf.mxu0
  %v1217 = vadd.f32 0.0, %v1216
  %v1218 = vpop.f32.mrf.mxu0
  %1219 = vmatprep.mubr.f32.mxu0 0.0
  %1220 = vmatmul.mubr.f32.gmra.mxu0 %v869
  %v1221 = vpop.f32.mrf.mxu0
  %v1222 = vadd.f32 0.0, %v1221
  %v1223 = vpop.f32.mrf.mxu0
  %1224 = vmatprep.mubr.f32.mxu0 0.0
  %1225 = vmatmul.mubr.f32.gmra.mxu0 %v872
  %v1226 = vpop.f32.mrf.mxu0
  %v1227 = vadd.f32 0.0, %v1226
  %v1228 = vpop.f32.mrf.mxu0
  %1229 = vmatprep.mubr.f32.mxu0 0.0
  %1230 = vmatmul.mubr.f32.gmra.mxu0 %v875
  %v1231 = vpop.f32.mrf.mxu0
  %v1232 = vadd.f32 0.0, %v1231
  %v1233 = vpop.f32.mrf.mxu0
  %1234 = vmatprep.mubr.f32.mxu0 0.0
  %1235 = vmatmul.mubr.f32.gmra.mxu0 %v878
  %v1236 = vpop.f32.mrf.mxu0
  %v1237 = vadd.f32 0.0, %v1236
  %v1238 = vpop.f32.mrf.mxu0
  %1239 = vmatprep.mubr.f32.mxu0 0.0
  %1240 = vmatmul.mubr.f32.gmra.mxu0 %v881
  %v1241 = vpop.f32.mrf.mxu0
  %v1242 = vadd.f32 0.0, %v1241
  %v1243 = vpop.f32.mrf.mxu0
  %1244 = vmatprep.mubr.f32.mxu0 0.0
  %1245 = vmatmul.mubr.f32.gmra.mxu0 %v884
  %v1246 = vpop.f32.mrf.mxu0
  %v1247 = vadd.f32 0.0, %v1246
  %v1248 = vpop.f32.mrf.mxu0
  %1249 = vmatprep.mubr.f32.mxu0 0.0
  %1250 = vmatmul.mubr.f32.gmra.mxu0 %v887
  %v1251 = vpop.f32.mrf.mxu0
  %v1252 = vadd.f32 0.0, %v1251
  %v1253 = vpop.f32.mrf.mxu0
  %1254 = vmatprep.mubr.f32.mxu0 0.0
  %1255 = vmatmul.mubr.f32.gmra.mxu0 %v890
  %v1256 = vpop.f32.mrf.mxu0
  %v1257 = vadd.f32 0.0, %v1256
  %v1258 = vpop.f32.mrf.mxu0
  %1259 = vmatprep.mubr.f32.mxu0 0.0
  %1260 = vmatmul.mubr.f32.gmra.mxu0 %v893
  %v1261 = vpop.f32.mrf.mxu0
  %v1262 = vadd.f32 0.0, %v1261
  %v1263 = vpop.f32.mrf.mxu0
  %1264 = vmatprep.mubr.f32.mxu0 0.0
  %1265 = vmatmul.mubr.f32.gmra.mxu0 %v896
  %v1266 = vpop.f32.mrf.mxu0
  %v1267 = vadd.f32 0.0, %v1266
  %v1268 = vpop.f32.mrf.mxu0
  %1269 = vmatprep.mubr.f32.mxu0 0.0
  %1270 = vmatmul.mubr.f32.gmra.mxu0 %v899
  %v1271 = vpop.f32.mrf.mxu0
  %v1272 = vadd.f32 0.0, %v1271
  %v1273 = vpop.f32.mrf.mxu0
  %1274 = vmatprep.mubr.f32.mxu0 0.0
  %1275 = vmatmul.mubr.f32.gmra.mxu0 %v902
  %v1276 = vpop.f32.mrf.mxu0
  %v1277 = vadd.f32 0.0, %v1276
  %v1278 = vpop.f32.mrf.mxu0
  %1279 = vmatprep.mubr.f32.mxu0 0.0
  %1280 = vmatmul.mubr.f32.gmra.mxu0 %v905
  %v1281 = vpop.f32.mrf.mxu0
  %v1282 = vadd.f32 0.0, %v1281
  %v1283 = vpop.f32.mrf.mxu0
  %1284 = vmatprep.mubr.f32.mxu0 0.0
  %1285 = vmatmul.mubr.f32.gmra.mxu0 %v908
  %v1286 = vpop.f32.mrf.mxu0
  %v1287 = vadd.f32 0.0, %v1286
  %v1288 = vpop.f32.mrf.mxu0
  %1289 = vdwg.mxu0
  %v1290 = vmax.f32 %v977, 0.0
  %v1291 = vmax.f32 %v982, 0.0
  %v1292 = vmax.f32 %v987, 0.0
  %v1293 = vmax.f32 %v992, 0.0
  %v1294 = vmax.f32 %v997, 0.0
  %v1295 = vmax.f32 %v1002, 0.0
  %v1296 = vmax.f32 %v1007, 0.0
  %v1297 = vmax.f32 %v1012, 0.0
  %v1298 = vmax.f32 %v1017, 0.0
  %v1299 = vmax.f32 %v1022, 0.0
  %v1300 = vmax.f32 %v1027, 0.0
  %v1301 = vmax.f32 %v1032, 0.0
  %v1302 = vmax.f32 %v1037, 0.0
  %v1303 = vmax.f32 %v1042, 0.0
  %v1304 = vmax.f32 %v1047, 0.0
  %v1305 = vmax.f32 %v1052, 0.0
  %v1306 = vmax.f32 %v1057, 0.0
  %v1307 = vmax.f32 %v1062, 0.0
  %v1308 = vmax.f32 %v1067, 0.0
  %v1309 = vmax.f32 %v1072, 0.0
  %v1310 = vmax.f32 %v1077, 0.0
  %v1311 = vmax.f32 %v1082, 0.0
  %v1312 = vmax.f32 %v1087, 0.0
  %v1313 = vmax.f32 %v1092, 0.0
  %v1314 = vmax.f32 %v1097, 0.0
  %v1315 = vmax.f32 %v1102, 0.0
  %v1316 = vmax.f32 %v1107, 0.0
  %v1317 = vmax.f32 %v1112, 0.0
  %v1318 = vmax.f32 %v1117, 0.0
  %v1319 = vmax.f32 %v1122, 0.0
  %v1320 = vmax.f32 %v1127, 0.0
  %v1321 = vmax.f32 %v1132, 0.0
  %v1322 = vmax.f32 %v1137, 0.0
  %v1323 = vmax.f32 %v1142, 0.0
  %v1324 = vmax.f32 %v1147, 0.0
  %v1325 = vmax.f32 %v1152, 0.0
  %v1326 = vmax.f32 %v1157, 0.0
  %v1327 = vmax.f32 %v1162, 0.0
  %v1328 = vmax.f32 %v1167, 0.0
  %v1329 = vmax.f32 %v1172, 0.0
  %v1330 = vmax.f32 %v1177, 0.0
  %v1331 = vmax.f32 %v1182, 0.0
  %v1332 = vmax.f32 %v1187, 0.0
  %v1333 = vmax.f32 %v1192, 0.0
  %v1334 = vmax.f32 %v1197, 0.0
  %v1335 = vmax.f32 %v1202, 0.0
  %v1336 = vmax.f32 %v1207, 0.0
  %v1337 = vmax.f32 %v1212, 0.0
  %v1338 = vmax.f32 %v1217, 0.0
  %v1339 = vmax.f32 %v1222, 0.0
  %v1340 = vmax.f32 %v1227, 0.0
  %v1341 = vmax.f32 %v1232, 0.0
  %v1342 = vmax.f32 %v1237, 0.0
  %v1343 = vmax.f32 %v1242, 0.0
  %v1344 = vmax.f32 %v1247, 0.0
  %v1345 = vmax.f32 %v1252, 0.0
  %v1346 = vmax.f32 %v1257, 0.0
  %v1347 = vmax.f32 %v1262, 0.0
  %v1348 = vmax.f32 %v1267, 0.0
  %v1349 = vmax.f32 %v1272, 0.0
  %v1350 = vmax.f32 %v1277, 0.0
  %v1351 = vmax.f32 %v1282, 0.0
  %v1352 = vmax.f32 %v1287, 0.0
  %v1353 = vld [vmem:[%s3] sm:$0xff]
  %v1354 = vld [vmem:[%s3 + $0x8] sm:$0xff]
  %vm1355 = vcmask 130048
  %v1357 = vsel %vm1355, %v1290, 0
  %v1360 = vsel %vm1355, %v1291, 0
  %v1363 = vsel %vm1355, %v1292, 0
  %v1366 = vsel %vm1355, %v1293, 0
  %v1369 = vsel %vm1355, %v1294, 0
  %v1372 = vsel %vm1355, %v1295, 0
  %v1375 = vsel %vm1355, %v1296, 0
  %v1378 = vsel %vm1355, %v1297, 0
  %v1381 = vsel %vm1355, %v1298, 0
  %v1384 = vsel %vm1355, %v1299, 0
  %v1387 = vsel %vm1355, %v1300, 0
  %v1390 = vsel %vm1355, %v1301, 0
  %v1393 = vsel %vm1355, %v1302, 0
  %v1396 = vsel %vm1355, %v1303, 0
  %v1399 = vsel %vm1355, %v1304, 0
  %v1402 = vsel %vm1355, %v1305, 0
  %v1405 = vsel %vm1355, %v1306, 0
  %v1408 = vsel %vm1355, %v1307, 0
  %v1411 = vsel %vm1355, %v1308, 0
  %v1414 = vsel %vm1355, %v1309, 0
  %v1417 = vsel %vm1355, %v1310, 0
  %v1420 = vsel %vm1355, %v1311, 0
  %v1423 = vsel %vm1355, %v1312, 0
  %v1426 = vsel %vm1355, %v1313, 0
  %v1429 = vsel %vm1355, %v1314, 0
  %v1432 = vsel %vm1355, %v1315, 0
  %v1435 = vsel %vm1355, %v1316, 0
  %v1438 = vsel %vm1355, %v1317, 0
  %v1441 = vsel %vm1355, %v1318, 0
  %v1444 = vsel %vm1355, %v1319, 0
  %v1447 = vsel %vm1355, %v1320, 0
  %v1450 = vsel %vm1355, %v1321, 0
  %v1453 = vsel %vm1355, %v1322, 0
  %v1456 = vsel %vm1355, %v1323, 0
  %v1459 = vsel %vm1355, %v1324, 0
  %v1462 = vsel %vm1355, %v1325, 0
  %v1465 = vsel %vm1355, %v1326, 0
  %v1468 = vsel %vm1355, %v1327, 0
  %v1471 = vsel %vm1355, %v1328, 0
  %v1474 = vsel %vm1355, %v1329, 0
  %v1477 = vsel %vm1355, %v1330, 0
  %v1480 = vsel %vm1355, %v1331, 0
  %v1483 = vsel %vm1355, %v1332, 0
  %v1486 = vsel %vm1355, %v1333, 0
  %v1489 = vsel %vm1355, %v1334, 0
  %v1492 = vsel %vm1355, %v1335, 0
  %v1495 = vsel %vm1355, %v1336, 0
  %v1498 = vsel %vm1355, %v1337, 0
  %v1501 = vsel %vm1355, %v1338, 0
  %v1504 = vsel %vm1355, %v1339, 0
  %v1507 = vsel %vm1355, %v1340, 0
  %v1510 = vsel %vm1355, %v1341, 0
  %v1513 = vsel %vm1355, %v1342, 0
  %v1516 = vsel %vm1355, %v1343, 0
  %v1519 = vsel %vm1355, %v1344, 0
  %v1522 = vsel %vm1355, %v1345, 0
  %v1525 = vsel %vm1355, %v1346, 0
  %v1528 = vsel %vm1355, %v1347, 0
  %v1531 = vsel %vm1355, %v1348, 0
  %v1534 = vsel %vm1355, %v1349, 0
  %v1537 = vsel %vm1355, %v1350, 0
  %v1540 = vsel %vm1355, %v1351, 0
  %v1543 = vsel %vm1355, %v1352, 0
  %1545 = vmatprep.subr.mxu0 0.0
  %1546 = vmatpush1.msra.mxu0 0.0
  %1547 = vmatprep.subr.mxu0 0.0
  %1548 = vmatpush1.msra.mxu0 0.0
  %1549 = vmatprep.subr.mxu0 0.0
  %1550 = vmatpush1.msra.mxu0 0.0
  %1551 = vmatprep.subr.mxu0 0.0
  %1552 = vmatpush1.msra.mxu0 0.0
  %1553 = vmatprep.subr.mxu0 0.0
  %1554 = vmatpush1.msra.mxu0 0.0
  %1555 = vmatprep.subr.mxu0 0.0
  %1556 = vmatpush1.msra.mxu0 0.0
  %1557 = vmatprep.subr.mxu0 0.0
  %1558 = vmatpush1.msra.mxu0 0.0
  %1559 = vmatprep.subr.mxu0 0.0
  %1560 = vmatpush1.msra.mxu0 0.0
  %1561 = vmatprep.subr.mxu0 0.0
  %1562 = vmatpush1.msra.mxu0 0.0
  %1563 = vmatprep.subr.mxu0 0.0
  %1564 = vmatpush1.msra.mxu0 0.0
  %1565 = vmatprep.subr.mxu0 0.0
  %1566 = vmatpush1.msra.mxu0 0.0
  %1567 = vmatprep.subr.mxu0 0.0
  %1568 = vmatpush1.msra.mxu0 0.0
  %1569 = vmatprep.subr.mxu0 0.0
  %1570 = vmatpush1.msra.mxu0 0.0
  %1571 = vmatprep.subr.mxu0 0.0
  %1572 = vmatpush1.msra.mxu0 0.0
  %1573 = vmatprep.subr.mxu0 0.0
  %1574 = vmatpush1.msra.mxu0 %v1354
  %1575 = vmatprep.subr.mxu0 0.0
  %1576 = vmatpush1.msra.mxu0 %v1353
  %1577 = vmatprep.subr.mxu0 0.0
  %1578 = vmatpush2.msra.mxu0 0.0
  %1579 = vmatprep.subr.mxu0 0.0
  %1580 = vmatpush2.msra.mxu0 0.0
  %1581 = vmatprep.subr.mxu0 0.0
  %1582 = vmatpush2.msra.mxu0 0.0
  %1583 = vmatprep.subr.mxu0 0.0
  %1584 = vmatpush2.msra.mxu0 0.0
  %1585 = vmatprep.subr.mxu0 0.0
  %1586 = vmatpush2.msra.mxu0 0.0
  %1587 = vmatprep.subr.mxu0 0.0
  %1588 = vmatpush2.msra.mxu0 0.0
  %1589 = vmatprep.subr.mxu0 0.0
  %1590 = vmatpush2.msra.mxu0 0.0
  %1591 = vmatprep.subr.mxu0 0.0
  %1592 = vmatpush2.msra.mxu0 0.0
  %1593 = vmatprep.subr.mxu0 0.0
  %1594 = vmatpush2.msra.mxu0 0.0
  %1595 = vmatprep.subr.mxu0 0.0
  %1596 = vmatpush2.msra.mxu0 0.0
  %1597 = vmatprep.subr.mxu0 0.0
  %1598 = vmatpush2.msra.mxu0 0.0
  %1599 = vmatprep.subr.mxu0 0.0
  %1600 = vmatpush2.msra.mxu0 0.0
  %1601 = vmatprep.subr.mxu0 0.0
  %1602 = vmatpush2.msra.mxu0 0.0
  %1603 = vmatprep.subr.mxu0 0.0
  %1604 = vmatpush2.msra.mxu0 0.0
  %1605 = vmatprep.subr.mxu0 0.0
  %1606 = vmatpush2.msra.mxu0 0.0
  %1607 = vmatprep.subr.mxu0 0.0
  %1608 = vmatpush2.msra.mxu0 0.0
  %1609 = vmatprep.mubr.f32.mxu0 0.0
  %1610 = vmatmul.mubr.f32.gmra.mxu0 %v1357
  %v1611 = vpop.f32.mrf.mxu0
  %v1612 = vadd.f32 0.0, %v1611
  %v1613 = vpop.f32.mrf.mxu0
  %1614 = vmatprep.mubr.f32.mxu0 0.0
  %1615 = vmatmul.mubr.f32.gmra.mxu0 %v1360
  %v1616 = vpop.f32.mrf.mxu0
  %v1617 = vadd.f32 0.0, %v1616
  %v1618 = vpop.f32.mrf.mxu0
  %1619 = vmatprep.mubr.f32.mxu0 0.0
  %1620 = vmatmul.mubr.f32.gmra.mxu0 %v1363
  %v1621 = vpop.f32.mrf.mxu0
  %v1622 = vadd.f32 0.0, %v1621
  %v1623 = vpop.f32.mrf.mxu0
  %1624 = vmatprep.mubr.f32.mxu0 0.0
  %1625 = vmatmul.mubr.f32.gmra.mxu0 %v1366
  %v1626 = vpop.f32.mrf.mxu0
  %v1627 = vadd.f32 0.0, %v1626
  %v1628 = vpop.f32.mrf.mxu0
  %1629 = vmatprep.mubr.f32.mxu0 0.0
  %1630 = vmatmul.mubr.f32.gmra.mxu0 %v1369
  %v1631 = vpop.f32.mrf.mxu0
  %v1632 = vadd.f32 0.0, %v1631
  %v1633 = vpop.f32.mrf.mxu0
  %1634 = vmatprep.mubr.f32.mxu0 0.0
  %1635 = vmatmul.mubr.f32.gmra.mxu0 %v1372
  %v1636 = vpop.f32.mrf.mxu0
  %v1637 = vadd.f32 0.0, %v1636
  %v1638 = vpop.f32.mrf.mxu0
  %1639 = vmatprep.mubr.f32.mxu0 0.0
  %1640 = vmatmul.mubr.f32.gmra.mxu0 %v1375
  %v1641 = vpop.f32.mrf.mxu0
  %v1642 = vadd.f32 0.0, %v1641
  %v1643 = vpop.f32.mrf.mxu0
  %1644 = vmatprep.mubr.f32.mxu0 0.0
  %1645 = vmatmul.mubr.f32.gmra.mxu0 %v1378
  %v1646 = vpop.f32.mrf.mxu0
  %v1647 = vadd.f32 0.0, %v1646
  %v1648 = vpop.f32.mrf.mxu0
  %1649 = vmatprep.mubr.f32.mxu0 0.0
  %1650 = vmatmul.mubr.f32.gmra.mxu0 %v1381
  %v1651 = vpop.f32.mrf.mxu0
  %v1652 = vadd.f32 0.0, %v1651
  %v1653 = vpop.f32.mrf.mxu0
  %1654 = vmatprep.mubr.f32.mxu0 0.0
  %1655 = vmatmul.mubr.f32.gmra.mxu0 %v1384
  %v1656 = vpop.f32.mrf.mxu0
  %v1657 = vadd.f32 0.0, %v1656
  %v1658 = vpop.f32.mrf.mxu0
  %1659 = vmatprep.mubr.f32.mxu0 0.0
  %1660 = vmatmul.mubr.f32.gmra.mxu0 %v1387
  %v1661 = vpop.f32.mrf.mxu0
  %v1662 = vadd.f32 0.0, %v1661
  %v1663 = vpop.f32.mrf.mxu0
  %1664 = vmatprep.mubr.f32.mxu0 0.0
  %1665 = vmatmul.mubr.f32.gmra.mxu0 %v1390
  %v1666 = vpop.f32.mrf.mxu0
  %v1667 = vadd.f32 0.0, %v1666
  %v1668 = vpop.f32.mrf.mxu0
  %1669 = vmatprep.mubr.f32.mxu0 0.0
  %1670 = vmatmul.mubr.f32.gmra.mxu0 %v1393
  %v1671 = vpop.f32.mrf.mxu0
  %v1672 = vadd.f32 0.0, %v1671
  %v1673 = vpop.f32.mrf.mxu0
  %1674 = vmatprep.mubr.f32.mxu0 0.0
  %1675 = vmatmul.mubr.f32.gmra.mxu0 %v1396
  %v1676 = vpop.f32.mrf.mxu0
  %v1677 = vadd.f32 0.0, %v1676
  %v1678 = vpop.f32.mrf.mxu0
  %1679 = vmatprep.mubr.f32.mxu0 0.0
  %1680 = vmatmul.mubr.f32.gmra.mxu0 %v1399
  %v1681 = vpop.f32.mrf.mxu0
  %v1682 = vadd.f32 0.0, %v1681
  %v1683 = vpop.f32.mrf.mxu0
  %1684 = vmatprep.mubr.f32.mxu0 0.0
  %1685 = vmatmul.mubr.f32.gmra.mxu0 %v1402
  %v1686 = vpop.f32.mrf.mxu0
  %v1687 = vadd.f32 0.0, %v1686
  %v1688 = vpop.f32.mrf.mxu0
  %1689 = vmatprep.mubr.f32.mxu0 0.0
  %1690 = vmatmul.mubr.f32.gmra.mxu0 %v1405
  %v1691 = vpop.f32.mrf.mxu0
  %v1692 = vadd.f32 0.0, %v1691
  %v1693 = vpop.f32.mrf.mxu0
  %1694 = vmatprep.mubr.f32.mxu0 0.0
  %1695 = vmatmul.mubr.f32.gmra.mxu0 %v1408
  %v1696 = vpop.f32.mrf.mxu0
  %v1697 = vadd.f32 0.0, %v1696
  %v1698 = vpop.f32.mrf.mxu0
  %1699 = vmatprep.mubr.f32.mxu0 0.0
  %1700 = vmatmul.mubr.f32.gmra.mxu0 %v1411
  %v1701 = vpop.f32.mrf.mxu0
  %v1702 = vadd.f32 0.0, %v1701
  %v1703 = vpop.f32.mrf.mxu0
  %1704 = vmatprep.mubr.f32.mxu0 0.0
  %1705 = vmatmul.mubr.f32.gmra.mxu0 %v1414
  %v1706 = vpop.f32.mrf.mxu0
  %v1707 = vadd.f32 0.0, %v1706
  %v1708 = vpop.f32.mrf.mxu0
  %1709 = vmatprep.mubr.f32.mxu0 0.0
  %1710 = vmatmul.mubr.f32.gmra.mxu0 %v1417
  %v1711 = vpop.f32.mrf.mxu0
  %v1712 = vadd.f32 0.0, %v1711
  %v1713 = vpop.f32.mrf.mxu0
  %1714 = vmatprep.mubr.f32.mxu0 0.0
  %1715 = vmatmul.mubr.f32.gmra.mxu0 %v1420
  %v1716 = vpop.f32.mrf.mxu0
  %v1717 = vadd.f32 0.0, %v1716
  %v1718 = vpop.f32.mrf.mxu0
  %1719 = vmatprep.mubr.f32.mxu0 0.0
  %1720 = vmatmul.mubr.f32.gmra.mxu0 %v1423
  %v1721 = vpop.f32.mrf.mxu0
  %v1722 = vadd.f32 0.0, %v1721
  %v1723 = vpop.f32.mrf.mxu0
  %1724 = vmatprep.mubr.f32.mxu0 0.0
  %1725 = vmatmul.mubr.f32.gmra.mxu0 %v1426
  %v1726 = vpop.f32.mrf.mxu0
  %v1727 = vadd.f32 0.0, %v1726
  %v1728 = vpop.f32.mrf.mxu0
  %1729 = vmatprep.mubr.f32.mxu0 0.0
  %1730 = vmatmul.mubr.f32.gmra.mxu0 %v1429
  %v1731 = vpop.f32.mrf.mxu0
  %v1732 = vadd.f32 0.0, %v1731
  %v1733 = vpop.f32.mrf.mxu0
  %1734 = vmatprep.mubr.f32.mxu0 0.0
  %1735 = vmatmul.mubr.f32.gmra.mxu0 %v1432
  %v1736 = vpop.f32.mrf.mxu0
  %v1737 = vadd.f32 0.0, %v1736
  %v1738 = vpop.f32.mrf.mxu0
  %1739 = vmatprep.mubr.f32.mxu0 0.0
  %1740 = vmatmul.mubr.f32.gmra.mxu0 %v1435
  %v1741 = vpop.f32.mrf.mxu0
  %v1742 = vadd.f32 0.0, %v1741
  %v1743 = vpop.f32.mrf.mxu0
  %1744 = vmatprep.mubr.f32.mxu0 0.0
  %1745 = vmatmul.mubr.f32.gmra.mxu0 %v1438
  %v1746 = vpop.f32.mrf.mxu0
  %v1747 = vadd.f32 0.0, %v1746
  %v1748 = vpop.f32.mrf.mxu0
  %1749 = vmatprep.mubr.f32.mxu0 0.0
  %1750 = vmatmul.mubr.f32.gmra.mxu0 %v1441
  %v1751 = vpop.f32.mrf.mxu0
  %v1752 = vadd.f32 0.0, %v1751
  %v1753 = vpop.f32.mrf.mxu0
  %1754 = vmatprep.mubr.f32.mxu0 0.0
  %1755 = vmatmul.mubr.f32.gmra.mxu0 %v1444
  %v1756 = vpop.f32.mrf.mxu0
  %v1757 = vadd.f32 0.0, %v1756
  %v1758 = vpop.f32.mrf.mxu0
  %1759 = vmatprep.mubr.f32.mxu0 0.0
  %1760 = vmatmul.mubr.f32.gmra.mxu0 %v1447
  %v1761 = vpop.f32.mrf.mxu0
  %v1762 = vadd.f32 0.0, %v1761
  %v1763 = vpop.f32.mrf.mxu0
  %1764 = vmatprep.mubr.f32.mxu0 0.0
  %1765 = vmatmul.mubr.f32.gmra.mxu0 %v1450
  %v1766 = vpop.f32.mrf.mxu0
  %v1767 = vadd.f32 0.0, %v1766
  %v1768 = vpop.f32.mrf.mxu0
  %1769 = vmatprep.mubr.f32.mxu0 0.0
  %1770 = vmatmul.mubr.f32.gmra.mxu0 %v1453
  %v1771 = vpop.f32.mrf.mxu0
  %v1772 = vadd.f32 0.0, %v1771
  %v1773 = vpop.f32.mrf.mxu0
  %1774 = vmatprep.mubr.f32.mxu0 0.0
  %1775 = vmatmul.mubr.f32.gmra.mxu0 %v1456
  %v1776 = vpop.f32.mrf.mxu0
  %v1777 = vadd.f32 0.0, %v1776
  %v1778 = vpop.f32.mrf.mxu0
  %1779 = vmatprep.mubr.f32.mxu0 0.0
  %1780 = vmatmul.mubr.f32.gmra.mxu0 %v1459
  %v1781 = vpop.f32.mrf.mxu0
  %v1782 = vadd.f32 0.0, %v1781
  %v1783 = vpop.f32.mrf.mxu0
  %1784 = vmatprep.mubr.f32.mxu0 0.0
  %1785 = vmatmul.mubr.f32.gmra.mxu0 %v1462
  %v1786 = vpop.f32.mrf.mxu0
  %v1787 = vadd.f32 0.0, %v1786
  %v1788 = vpop.f32.mrf.mxu0
  %1789 = vmatprep.mubr.f32.mxu0 0.0
  %1790 = vmatmul.mubr.f32.gmra.mxu0 %v1465
  %v1791 = vpop.f32.mrf.mxu0
  %v1792 = vadd.f32 0.0, %v1791
  %v1793 = vpop.f32.mrf.mxu0
  %1794 = vmatprep.mubr.f32.mxu0 0.0
  %1795 = vmatmul.mubr.f32.gmra.mxu0 %v1468
  %v1796 = vpop.f32.mrf.mxu0
  %v1797 = vadd.f32 0.0, %v1796
  %v1798 = vpop.f32.mrf.mxu0
  %1799 = vmatprep.mubr.f32.mxu0 0.0
  %1800 = vmatmul.mubr.f32.gmra.mxu0 %v1471
  %v1801 = vpop.f32.mrf.mxu0
  %v1802 = vadd.f32 0.0, %v1801
  %v1803 = vpop.f32.mrf.mxu0
  %1804 = vmatprep.mubr.f32.mxu0 0.0
  %1805 = vmatmul.mubr.f32.gmra.mxu0 %v1474
  %v1806 = vpop.f32.mrf.mxu0
  %v1807 = vadd.f32 0.0, %v1806
  %v1808 = vpop.f32.mrf.mxu0
  %1809 = vmatprep.mubr.f32.mxu0 0.0
  %1810 = vmatmul.mubr.f32.gmra.mxu0 %v1477
  %v1811 = vpop.f32.mrf.mxu0
  %v1812 = vadd.f32 0.0, %v1811
  %v1813 = vpop.f32.mrf.mxu0
  %1814 = vmatprep.mubr.f32.mxu0 0.0
  %1815 = vmatmul.mubr.f32.gmra.mxu0 %v1480
  %v1816 = vpop.f32.mrf.mxu0
  %v1817 = vadd.f32 0.0, %v1816
  %v1818 = vpop.f32.mrf.mxu0
  %1819 = vmatprep.mubr.f32.mxu0 0.0
  %1820 = vmatmul.mubr.f32.gmra.mxu0 %v1483
  %v1821 = vpop.f32.mrf.mxu0
  %v1822 = vadd.f32 0.0, %v1821
  %v1823 = vpop.f32.mrf.mxu0
  %1824 = vmatprep.mubr.f32.mxu0 0.0
  %1825 = vmatmul.mubr.f32.gmra.mxu0 %v1486
  %v1826 = vpop.f32.mrf.mxu0
  %v1827 = vadd.f32 0.0, %v1826
  %v1828 = vpop.f32.mrf.mxu0
  %1829 = vmatprep.mubr.f32.mxu0 0.0
  %1830 = vmatmul.mubr.f32.gmra.mxu0 %v1489
  %v1831 = vpop.f32.mrf.mxu0
  %v1832 = vadd.f32 0.0, %v1831
  %v1833 = vpop.f32.mrf.mxu0
  %1834 = vmatprep.mubr.f32.mxu0 0.0
  %1835 = vmatmul.mubr.f32.gmra.mxu0 %v1492
  %v1836 = vpop.f32.mrf.mxu0
  %v1837 = vadd.f32 0.0, %v1836
  %v1838 = vpop.f32.mrf.mxu0
  %1839 = vmatprep.mubr.f32.mxu0 0.0
  %1840 = vmatmul.mubr.f32.gmra.mxu0 %v1495
  %v1841 = vpop.f32.mrf.mxu0
  %v1842 = vadd.f32 0.0, %v1841
  %v1843 = vpop.f32.mrf.mxu0
  %1844 = vmatprep.mubr.f32.mxu0 0.0
  %1845 = vmatmul.mubr.f32.gmra.mxu0 %v1498
  %v1846 = vpop.f32.mrf.mxu0
  %v1847 = vadd.f32 0.0, %v1846
  %v1848 = vpop.f32.mrf.mxu0
  %1849 = vmatprep.mubr.f32.mxu0 0.0
  %1850 = vmatmul.mubr.f32.gmra.mxu0 %v1501
  %v1851 = vpop.f32.mrf.mxu0
  %v1852 = vadd.f32 0.0, %v1851
  %v1853 = vpop.f32.mrf.mxu0
  %1854 = vmatprep.mubr.f32.mxu0 0.0
  %1855 = vmatmul.mubr.f32.gmra.mxu0 %v1504
  %v1856 = vpop.f32.mrf.mxu0
  %v1857 = vadd.f32 0.0, %v1856
  %v1858 = vpop.f32.mrf.mxu0
  %1859 = vmatprep.mubr.f32.mxu0 0.0
  %1860 = vmatmul.mubr.f32.gmra.mxu0 %v1507
  %v1861 = vpop.f32.mrf.mxu0
  %v1862 = vadd.f32 0.0, %v1861
  %v1863 = vpop.f32.mrf.mxu0
  %1864 = vmatprep.mubr.f32.mxu0 0.0
  %1865 = vmatmul.mubr.f32.gmra.mxu0 %v1510
  %v1866 = vpop.f32.mrf.mxu0
  %v1867 = vadd.f32 0.0, %v1866
  %v1868 = vpop.f32.mrf.mxu0
  %1869 = vmatprep.mubr.f32.mxu0 0.0
  %1870 = vmatmul.mubr.f32.gmra.mxu0 %v1513
  %v1871 = vpop.f32.mrf.mxu0
  %v1872 = vadd.f32 0.0, %v1871
  %v1873 = vpop.f32.mrf.mxu0
  %1874 = vmatprep.mubr.f32.mxu0 0.0
  %1875 = vmatmul.mubr.f32.gmra.mxu0 %v1516
  %v1876 = vpop.f32.mrf.mxu0
  %v1877 = vadd.f32 0.0, %v1876
  %v1878 = vpop.f32.mrf.mxu0
  %1879 = vmatprep.mubr.f32.mxu0 0.0
  %1880 = vmatmul.mubr.f32.gmra.mxu0 %v1519
  %v1881 = vpop.f32.mrf.mxu0
  %v1882 = vadd.f32 0.0, %v1881
  %v1883 = vpop.f32.mrf.mxu0
  %1884 = vmatprep.mubr.f32.mxu0 0.0
  %1885 = vmatmul.mubr.f32.gmra.mxu0 %v1522
  %v1886 = vpop.f32.mrf.mxu0
  %v1887 = vadd.f32 0.0, %v1886
  %v1888 = vpop.f32.mrf.mxu0
  %1889 = vmatprep.mubr.f32.mxu0 0.0
  %1890 = vmatmul.mubr.f32.gmra.mxu0 %v1525
  %v1891 = vpop.f32.mrf.mxu0
  %v1892 = vadd.f32 0.0, %v1891
  %v1893 = vpop.f32.mrf.mxu0
  %1894 = vmatprep.mubr.f32.mxu0 0.0
  %1895 = vmatmul.mubr.f32.gmra.mxu0 %v1528
  %v1896 = vpop.f32.mrf.mxu0
  %v1897 = vadd.f32 0.0, %v1896
  %v1898 = vpop.f32.mrf.mxu0
  %1899 = vmatprep.mubr.f32.mxu0 0.0
  %1900 = vmatmul.mubr.f32.gmra.mxu0 %v1531
  %v1901 = vpop.f32.mrf.mxu0
  %v1902 = vadd.f32 0.0, %v1901
  %v1903 = vpop.f32.mrf.mxu0
  %1904 = vmatprep.mubr.f32.mxu0 0.0
  %1905 = vmatmul.mubr.f32.gmra.mxu0 %v1534
  %v1906 = vpop.f32.mrf.mxu0
  %v1907 = vadd.f32 0.0, %v1906
  %v1908 = vpop.f32.mrf.mxu0
  %1909 = vmatprep.mubr.f32.mxu0 0.0
  %1910 = vmatmul.mubr.f32.gmra.mxu0 %v1537
  %v1911 = vpop.f32.mrf.mxu0
  %v1912 = vadd.f32 0.0, %v1911
  %v1913 = vpop.f32.mrf.mxu0
  %1914 = vmatprep.mubr.f32.mxu0 0.0
  %1915 = vmatmul.mubr.f32.gmra.mxu0 %v1540
  %v1916 = vpop.f32.mrf.mxu0
  %v1917 = vadd.f32 0.0, %v1916
  %v1918 = vpop.f32.mrf.mxu0
  %1919 = vmatprep.mubr.f32.mxu0 0.0
  %1920 = vmatmul.mubr.f32.gmra.mxu0 %v1543
  %v1921 = vpop.f32.mrf.mxu0
  %v1922 = vadd.f32 0.0, %v1921
  %v1923 = vpop.f32.mrf.mxu0
  %1924 = vdwg.mxu0
  %v1925 = vmax.f32 %v1612, 0.0
  %v1926 = vmax.f32 %v1617, 0.0
  %v1927 = vmax.f32 %v1622, 0.0
  %v1928 = vmax.f32 %v1627, 0.0
  %v1929 = vmax.f32 %v1632, 0.0
  %v1930 = vmax.f32 %v1637, 0.0
  %v1931 = vmax.f32 %v1642, 0.0
  %v1932 = vmax.f32 %v1647, 0.0
  %v1933 = vmax.f32 %v1652, 0.0
  %v1934 = vmax.f32 %v1657, 0.0
  %v1935 = vmax.f32 %v1662, 0.0
  %v1936 = vmax.f32 %v1667, 0.0
  %v1937 = vmax.f32 %v1672, 0.0
  %v1938 = vmax.f32 %v1677, 0.0
  %v1939 = vmax.f32 %v1682, 0.0
  %v1940 = vmax.f32 %v1687, 0.0
  %v1941 = vmax.f32 %v1692, 0.0
  %v1942 = vmax.f32 %v1697, 0.0
  %v1943 = vmax.f32 %v1702, 0.0
  %v1944 = vmax.f32 %v1707, 0.0
  %v1945 = vmax.f32 %v1712, 0.0
  %v1946 = vmax.f32 %v1717, 0.0
  %v1947 = vmax.f32 %v1722, 0.0
  %v1948 = vmax.f32 %v1727, 0.0
  %v1949 = vmax.f32 %v1732, 0.0
  %v1950 = vmax.f32 %v1737, 0.0
  %v1951 = vmax.f32 %v1742, 0.0
  %v1952 = vmax.f32 %v1747, 0.0
  %v1953 = vmax.f32 %v1752, 0.0
  %v1954 = vmax.f32 %v1757, 0.0
  %v1955 = vmax.f32 %v1762, 0.0
  %v1956 = vmax.f32 %v1767, 0.0
  %v1957 = vmax.f32 %v1772, 0.0
  %v1958 = vmax.f32 %v1777, 0.0
  %v1959 = vmax.f32 %v1782, 0.0
  %v1960 = vmax.f32 %v1787, 0.0
  %v1961 = vmax.f32 %v1792, 0.0
  %v1962 = vmax.f32 %v1797, 0.0
  %v1963 = vmax.f32 %v1802, 0.0
  %v1964 = vmax.f32 %v1807, 0.0
  %v1965 = vmax.f32 %v1812, 0.0
  %v1966 = vmax.f32 %v1817, 0.0
  %v1967 = vmax.f32 %v1822, 0.0
  %v1968 = vmax.f32 %v1827, 0.0
  %v1969 = vmax.f32 %v1832, 0.0
  %v1970 = vmax.f32 %v1837, 0.0
  %v1971 = vmax.f32 %v1842, 0.0
  %v1972 = vmax.f32 %v1847, 0.0
  %v1973 = vmax.f32 %v1852, 0.0
  %v1974 = vmax.f32 %v1857, 0.0
  %v1975 = vmax.f32 %v1862, 0.0
  %v1976 = vmax.f32 %v1867, 0.0
  %v1977 = vmax.f32 %v1872, 0.0
  %v1978 = vmax.f32 %v1877, 0.0
  %v1979 = vmax.f32 %v1882, 0.0
  %v1980 = vmax.f32 %v1887, 0.0
  %v1981 = vmax.f32 %v1892, 0.0
  %v1982 = vmax.f32 %v1897, 0.0
  %v1983 = vmax.f32 %v1902, 0.0
  %v1984 = vmax.f32 %v1907, 0.0
  %v1985 = vmax.f32 %v1912, 0.0
  %v1986 = vmax.f32 %v1917, 0.0
  %v1987 = vmax.f32 %v1922, 0.0
  %vm1988 = vcmask 64512
  %1989 = vst.msk [vmem:[%s4] sm:$0xff] %vm1988, %v1925
  %1990 = vst.msk [vmem:[%s4 + $0x8] sm:$0xff] %vm1988, %v1926
  %1991 = vst.msk [vmem:[%s4 + $0x10] sm:$0xff] %vm1988, %v1927
  %1992 = vst.msk [vmem:[%s4 + $0x18] sm:$0xff] %vm1988, %v1928
  %1993 = vst.msk [vmem:[%s4 + $0x20] sm:$0xff] %vm1988, %v1929
  %1994 = vst.msk [vmem:[%s4 + $0x28] sm:$0xff] %vm1988, %v1930
  %1995 = vst.msk [vmem:[%s4 + $0x30] sm:$0xff] %vm1988, %v1931
  %1996 = vst.msk [vmem:[%s4 + $0x38] sm:$0xff] %vm1988, %v1932
  %1997 = vst.msk [vmem:[%s4 + $0x40] sm:$0xff] %vm1988, %v1933
  %1998 = vst.msk [vmem:[%s4 + $0x48] sm:$0xff] %vm1988, %v1934
  %1999 = vst.msk [vmem:[%s4 + $0x50] sm:$0xff] %vm1988, %v1935
  %2000 = vst.msk [vmem:[%s4 + $0x58] sm:$0xff] %vm1988, %v1936
  %2001 = vst.msk [vmem:[%s4 + $0x60] sm:$0xff] %vm1988, %v1937
  %2002 = vst.msk [vmem:[%s4 + $0x68] sm:$0xff] %vm1988, %v1938
  %2003 = vst.msk [vmem:[%s4 + $0x70] sm:$0xff] %vm1988, %v1939
  %2004 = vst.msk [vmem:[%s4 + $0x78] sm:$0xff] %vm1988, %v1940
  %2005 = vst.msk [vmem:[%s4 + $0x80] sm:$0xff] %vm1988, %v1941
  %2006 = vst.msk [vmem:[%s4 + $0x88] sm:$0xff] %vm1988, %v1942
  %2007 = vst.msk [vmem:[%s4 + $0x90] sm:$0xff] %vm1988, %v1943
  %2008 = vst.msk [vmem:[%s4 + $0x98] sm:$0xff] %vm1988, %v1944
  %2009 = vst.msk [vmem:[%s4 + $0xa0] sm:$0xff] %vm1988, %v1945
  %2010 = vst.msk [vmem:[%s4 + $0xa8] sm:$0xff] %vm1988, %v1946
  %2011 = vst.msk [vmem:[%s4 + $0xb0] sm:$0xff] %vm1988, %v1947
  %2012 = vst.msk [vmem:[%s4 + $0xb8] sm:$0xff] %vm1988, %v1948
  %2013 = vst.msk [vmem:[%s4 + $0xc0] sm:$0xff] %vm1988, %v1949
  %2014 = vst.msk [vmem:[%s4 + $0xc8] sm:$0xff] %vm1988, %v1950
  %2015 = vst.msk [vmem:[%s4 + $0xd0] sm:$0xff] %vm1988, %v1951
  %2016 = vst.msk [vmem:[%s4 + $0xd8] sm:$0xff] %vm1988, %v1952
  %2017 = vst.msk [vmem:[%s4 + $0xe0] sm:$0xff] %vm1988, %v1953
  %2018 = vst.msk [vmem:[%s4 + $0xe8] sm:$0xff] %vm1988, %v1954
  %2019 = vst.msk [vmem:[%s4 + $0xf0] sm:$0xff] %vm1988, %v1955
  %2020 = vst.msk [vmem:[%s4 + $0xf8] sm:$0xff] %vm1988, %v1956
  %2021 = vst.msk [vmem:[%s4 + $0x100] sm:$0xff] %vm1988, %v1957
  %2022 = vst.msk [vmem:[%s4 + $0x108] sm:$0xff] %vm1988, %v1958
  %2023 = vst.msk [vmem:[%s4 + $0x110] sm:$0xff] %vm1988, %v1959
  %2024 = vst.msk [vmem:[%s4 + $0x118] sm:$0xff] %vm1988, %v1960
  %2025 = vst.msk [vmem:[%s4 + $0x120] sm:$0xff] %vm1988, %v1961
  %2026 = vst.msk [vmem:[%s4 + $0x128] sm:$0xff] %vm1988, %v1962
  %2027 = vst.msk [vmem:[%s4 + $0x130] sm:$0xff] %vm1988, %v1963
  %2028 = vst.msk [vmem:[%s4 + $0x138] sm:$0xff] %vm1988, %v1964
  %2029 = vst.msk [vmem:[%s4 + $0x140] sm:$0xff] %vm1988, %v1965
  %2030 = vst.msk [vmem:[%s4 + $0x148] sm:$0xff] %vm1988, %v1966
  %2031 = vst.msk [vmem:[%s4 + $0x150] sm:$0xff] %vm1988, %v1967
  %2032 = vst.msk [vmem:[%s4 + $0x158] sm:$0xff] %vm1988, %v1968
  %2033 = vst.msk [vmem:[%s4 + $0x160] sm:$0xff] %vm1988, %v1969
  %2034 = vst.msk [vmem:[%s4 + $0x168] sm:$0xff] %vm1988, %v1970
  %2035 = vst.msk [vmem:[%s4 + $0x170] sm:$0xff] %vm1988, %v1971
  %2036 = vst.msk [vmem:[%s4 + $0x178] sm:$0xff] %vm1988, %v1972
  %2037 = vst.msk [vmem:[%s4 + $0x180] sm:$0xff] %vm1988, %v1973
  %2038 = vst.msk [vmem:[%s4 + $0x188] sm:$0xff] %vm1988, %v1974
  %2039 = vst.msk [vmem:[%s4 + $0x190] sm:$0xff] %vm1988, %v1975
  %2040 = vst.msk [vmem:[%s4 + $0x198] sm:$0xff] %vm1988, %v1976
  %2041 = vst.msk [vmem:[%s4 + $0x1a0] sm:$0xff] %vm1988, %v1977
  %2042 = vst.msk [vmem:[%s4 + $0x1a8] sm:$0xff] %vm1988, %v1978
  %2043 = vst.msk [vmem:[%s4 + $0x1b0] sm:$0xff] %vm1988, %v1979
  %2044 = vst.msk [vmem:[%s4 + $0x1b8] sm:$0xff] %vm1988, %v1980
  %2045 = vst.msk [vmem:[%s4 + $0x1c0] sm:$0xff] %vm1988, %v1981
  %2046 = vst.msk [vmem:[%s4 + $0x1c8] sm:$0xff] %vm1988, %v1982
  %2047 = vst.msk [vmem:[%s4 + $0x1d0] sm:$0xff] %vm1988, %v1983
  %2048 = vst.msk [vmem:[%s4 + $0x1d8] sm:$0xff] %vm1988, %v1984
  %2049 = vst.msk [vmem:[%s4 + $0x1e0] sm:$0xff] %vm1988, %v1985
  %2050 = vst.msk [vmem:[%s4 + $0x1e8] sm:$0xff] %vm1988, %v1986
  %vm2051 = vcmask 60416
  %2052 = vst.msk [vmem:[%s4 + $0x1f0] sm:$0xf] %vm2051, %v1987
  // Predicated region
  $region18: #{tpu_custom_call.1} parent=0 // pred_check
    _
  $region19: #{tpu_custom_call.1} parent=0 // pred_check_branch
    %2054 = sbr.rel (0) target = $region21
  $region20: #{tpu_custom_call.1} parent=0 // pred_region
    _
  $region21: #{tpu_custom_call.1} parent=0 // pred_fallthru
    _
  // Predicated region
  $region22: #{tpu_custom_call.1} parent=0 // pred_check
    _
  $region23: #{tpu_custom_call.1} parent=0 // pred_check_branch
    %2056 = sbr.rel (0) target = $region25
  $region24: #{tpu_custom_call.1} parent=0 // pred_region
    _
  $region25: #{tpu_custom_call.1} parent=0 // pred_fallthru
    _

</llo_original>
